<compile_context>
chip_gen: v7x
topology: tpu7x:2x2x1
jax: 0.10.0
libtpu: 0.0.40
codegen_flags: <defaults>
</compile_context>

<pallas_src>
import functools
import math

import jax
import jax.numpy as jnp
from jax.experimental import pallas as pl
from jax.experimental.pallas import tpu as pltpu

VMEM_LIMIT_BYTES = 32 * 1024 * 1024   # raise v5e's 16 MiB scoped default; safe on v6e/v7x
_TINY_THRESHOLD = 1 << 20             # MACs below which pallas_call overhead beats the win


def _concat_fc_kernel_f32(g_ref, l_ref, w_ref, b_ref, o_ref, *, kg_tiles):
    """out = [g, l] @ W + b; the f32 output block itself is the accumulator."""
    k = pl.program_id(2)
    cdt = w_ref.dtype  # compute dtype follows the (bf16) weights

    @pl.when(k == 0)
    def _():
        # Initialize with the bias: merges zero-init and bias-add into one write.
        o_ref[...] = jnp.broadcast_to(b_ref[...], o_ref.shape).astype(o_ref.dtype)

    # First kg_tiles steps reduce over the global half of the concatenated dim.
    @pl.when(k < kg_tiles)
    def _():
        o_ref[...] += jnp.dot(g_ref[...].astype(cdt), w_ref[...],
                              preferred_element_type=jnp.float32)

    # Remaining steps reduce over the local half.
    @pl.when(k >= kg_tiles)
    def _():
        o_ref[...] += jnp.dot(l_ref[...].astype(cdt), w_ref[...],
                              preferred_element_type=jnp.float32)


def _concat_fc_kernel_acc(g_ref, l_ref, w_ref, b_ref, o_ref, acc_ref, *, kg_tiles):
    """Same math, with an explicit f32 scratch accumulator (for non-f32 outputs)."""
    k = pl.program_id(2)
    nk = pl.num_programs(2)
    cdt = w_ref.dtype

    @pl.when(k == 0)
    def _():
        acc_ref[...] = jnp.broadcast_to(b_ref[...].astype(jnp.float32), acc_ref.shape)

    @pl.when(k < kg_tiles)
    def _():
        acc_ref[...] += jnp.dot(g_ref[...].astype(cdt), w_ref[...],
                                preferred_element_type=jnp.float32)

    @pl.when(k >= kg_tiles)
    def _():
        acc_ref[...] += jnp.dot(l_ref[...].astype(cdt), w_ref[...],
                                preferred_element_type=jnp.float32)

    @pl.when(k == nk - 1)
    def _():
        o_ref[...] = acc_ref[...].astype(o_ref.dtype)


def _pick_divisor(dim, candidates):
    for c in candidates:
        if c <= dim and dim % c == 0:
            return c
    return None


def _select_tiles(B, Dg, Dl, out_ch):
    """Pick (tb, tn, tk) or return None to fall back to XLA."""
    # Lane-dense output tile (multiple of 128), or full out_ch if it is small & ragged.
    tn = _pick_divisor(out_ch, (1024, 512, 256, 128))
    if tn is None and out_ch <= 1024:
        tn = out_ch  # full-dim block is always layout-legal
    # K tile must divide BOTH halves so the concat boundary lands exactly on a tile edge.
    tk = None
    for cand in (512, 256, 128):
        if Dg % cand == 0 and Dl % cand == 0:
            tk = cand
            break
    tb = B if B <= 512 else _pick_divisor(B, (512, 256, 128, 64, 32, 16, 8))
    if tn is None or tk is None or tb is None:
        return None

    # v7x has 2 TensorCores: make sure at least one "parallel" axis has >= 2 blocks.
    if (B // tb) * (out_ch // tn) < 2:
        if out_ch // tn < 2 and out_ch % 256 == 0:
            tn = out_ch // 2          # still a multiple of 128 and divides out_ch
        elif B // tb < 2 and tb % 16 == 0:
            tb //= 2                  # still a multiple of 8 and divides B
    return tb, tn, tk


def prepare_params(torch_weight, torch_bias, dtype=jnp.bfloat16):
    """One-time layout/dtype conversion from the PyTorch Linear (out, in) weight.

    Returns (w_t, bias): w_t is the stacked transposed weight (Dg+Dl, out) in `dtype`
    (bf16 by default: halves weight HBM traffic, enables the native MXU bf16 path).
    Bias stays f32 (accumulation is f32).
    """
    w_t = jnp.asarray(torch_weight, dtype=jnp.float32).T.astype(dtype)
    bias = jnp.asarray(torch_bias, dtype=jnp.float32)
    return w_t, bias


def init_concat_params(key, inchannels, outchannels, dtype=jnp.bfloat16):
    """Mirrors Concat.init_weights(): xavier_uniform_ weight, bias filled with 0.01."""
    limit = math.sqrt(6.0 / (inchannels + outchannels))
    weight = jax.random.uniform(key, (outchannels, inchannels), dtype=jnp.float32,
                                minval=-limit, maxval=limit)
    bias = jnp.full((outchannels,), 0.01, dtype=jnp.float32)
    return weight, bias, prepare_params(weight, bias, dtype=dtype)


def _concat_fc_xla(global_x, local_x, w_t, bias, out_dtype):
    x = jnp.concatenate([global_x, local_x], axis=1)
    acc = jnp.dot(x.astype(w_t.dtype), w_t, preferred_element_type=jnp.float32)
    return (acc + bias.astype(jnp.float32)).astype(out_dtype)


def concat_forward(global_x, local_x, params):
    """global_x: (B, Dg), local_x: (B, Dl) or None, params = (w_t, bias)."""
    if local_x is None:
        return global_x

    w_t, bias = params
    B, Dg = global_x.shape
    _, Dl = local_x.shape
    Kin, out_ch = w_t.shape
    assert Kin == Dg + Dl, (Kin, Dg, Dl)
    assert bias.shape == (out_ch,)
    out_dtype = global_x.dtype

    tiles = _select_tiles(B, Dg, Dl, out_ch)
    # TODO(synk): shapes where no single tk divides both Dg and Dl could be zero-padded at
    # prepare time instead of taking the (still correct) XLA fallback.
    if tiles is None or B * Kin * out_ch < _TINY_THRESHOLD:
        return _concat_fc_xla(global_x, local_x, w_t, bias, out_dtype)
    tb, tn, tk = tiles

    kg_tiles = Dg // tk
    nk = Kin // tk
    grid = (B // tb, out_ch // tn, nk)

    bias2d = bias.astype(jnp.float32).reshape(1, out_ch)

    # f32 outputs accumulate directly into the output block; others use an f32 scratch.
    if jnp.dtype(out_dtype) == jnp.dtype(jnp.float32):
        kernel = functools.partial(_concat_fc_kernel_f32, kg_tiles=kg_tiles)
        scratch = []
    else:
        kernel = functools.partial(_concat_fc_kernel_acc, kg_tiles=kg_tiles)
        scratch = [pltpu.VMEM((tb, tn), jnp.float32)]

    # Clamped index maps: during the local phase the global block index stays at its last
    # value (and vice versa), so Pallas skips the re-fetch -- no wasted DMA traffic.
    g_map = lambda i, j, k: (i, jnp.minimum(k, kg_tiles - 1))
    l_map = lambda i, j, k: (i, jnp.maximum(k - kg_tiles, 0))
    w_map = lambda i, j, k: (k, j)   # stacked weight: K axis walks straight through it
    b_map = lambda i, j, k: (0, j)
    o_map = lambda i, j, k: (i, j)

    act_isz = jnp.dtype(global_x.dtype).itemsize
    w_isz = jnp.dtype(w_t.dtype).itemsize
    out_isz = jnp.dtype(out_dtype).itemsize
    flops = 2 * B * Kin * out_ch
    bytes_accessed = ((out_ch // tn) * B * Kin * act_isz     # activations re-streamed per j tile
                      + (B // tb) * Kin * out_ch * w_isz     # weights re-streamed per batch tile
                      + out_ch * 4 + B * out_ch * out_isz)

    return pl.pallas_call(
        kernel,
        out_shape=jax.ShapeDtypeStruct((B, out_ch), out_dtype),
        grid_spec=pltpu.PrefetchScalarGridSpec(
            num_scalar_prefetch=0,
            grid=grid,
            in_specs=[
                pl.BlockSpec((tb, tk), g_map),
                pl.BlockSpec((tb, tk), l_map),
                pl.BlockSpec((tk, tn), w_map),
                pl.BlockSpec((1, tn), b_map),
            ],
            out_specs=pl.BlockSpec((tb, tn), o_map),
            scratch_shapes=scratch,
        ),
        compiler_params=pltpu.CompilerParams(
            dimension_semantics=("parallel", "parallel", "arbitrary"),
            vmem_limit_bytes=VMEM_LIMIT_BYTES,
        ),
        cost_estimate=pl.CostEstimate(flops=flops, transcendentals=0,
                                      bytes_accessed=bytes_accessed),
    )(global_x, local_x, w_t, bias2d)


if __name__ == "__main__":
    key = jax.random.PRNGKey(0)
    k_g, k_l, k_w, k_g2, k_l2, k_w2 = jax.random.split(key, 6)

    # Modest, lane-aligned demo shapes, big enough that the Pallas path is taken.
    batch, global_feat, local_feat, outchannels = 128, 512, 512, 512
    global_x = jax.random.normal(k_g, (batch, global_feat), dtype=jnp.float32)
    local_x = jax.random.normal(k_l, (batch, local_feat), dtype=jnp.float32)
    weight, bias, params = init_concat_params(k_w, global_feat + local_feat, outchannels)

    # Path with local_x: concat + linear fused in the Pallas kernel.
    out = jax.block_until_ready(concat_forward(global_x, local_x, params))
    assert out.shape == (batch, outchannels) and out.dtype == global_x.dtype

    # Reference with the same bf16 weights / f32 accumulation as the kernel (tight check).
    w_t, b_f32 = params
    x_cat = jnp.concatenate([global_x, local_x], axis=1)
    ref_bf16 = jnp.dot(x_cat.astype(w_t.dtype), w_t,
                       preferred_element_type=jnp.float32) + b_f32
    assert jnp.allclose(out, ref_bf16, atol=1e-2, rtol=1e-2), \
        float(jnp.max(jnp.abs(out - ref_bf16)))

    # Full-precision PyTorch-semantics reference (looser: bf16 weight quantization).
    ref_f32 = x_cat @ weight.T + bias
    assert jnp.allclose(out, ref_f32, atol=0.15, rtol=0.05), \
        float(jnp.max(jnp.abs(out - ref_f32)))

    # Path without local_x: identity passthrough (no kernel needed).
    out_none = jax.block_until_ready(concat_forward(global_x, None, params))
    assert jnp.array_equal(out_none, global_x)

    # Tiny / ragged shapes take the XLA fallback with identical math.
    gs = jax.random.normal(k_g2, (4, 48), dtype=jnp.float32)
    ls = jax.random.normal(k_l2, (4, 20), dtype=jnp.float32)
    w_s, b_s, p_s = init_concat_params(k_w2, 68, 24)
    out_s = jax.block_until_ready(concat_forward(gs, ls, p_s))
    ref_s = jnp.dot(jnp.concatenate([gs, ls], 1).astype(p_s[0].dtype), p_s[0],
                    preferred_element_type=jnp.float32) + p_s[1]
    assert jnp.allclose(out_s, ref_s, atol=1e-2, rtol=1e-2)

    print("KERNEL_OK")
</pallas_src>

<mosaic_0001>
module attributes {stable_mosaic.version = 11 : i64} {
  func.func @_concat_fc_kernel_f32(%arg0: i32, %arg1: i32, %arg2: i32, %arg3: memref<128x512xf32, #tpu.memory_space<vmem>>, %arg4: memref<128x512xf32, #tpu.memory_space<vmem>>, %arg5: memref<512x256xbf16, #tpu.memory_space<vmem>>, %arg6: memref<1x256xf32, #tpu.memory_space<vmem>>, %arg7: memref<128x256xf32, #tpu.memory_space<vmem>>) attributes {dimension_semantics = [#tpu.dimension_semantics<parallel>, #tpu.dimension_semantics<parallel>, #tpu.dimension_semantics<arbitrary>], iteration_bounds = array<i64: 1, 2, 2>, scalar_prefetch = 0 : i64, scratch_operands = 0 : i64, tpu.core_type = #tpu.core_type<tc>, window_params = [{transform_indices = @transform_0, window_bounds = array<i64: 128, 512>}, {transform_indices = @transform_1, window_bounds = array<i64: 128, 512>}, {transform_indices = @transform_2, window_bounds = array<i64: 512, 256>}, {transform_indices = @transform_3, window_bounds = array<i64: 1, 256>}, {transform_indices = @transform_4, window_bounds = array<i64: 128, 256>}]} {
    %c0_i32 = arith.constant 0 : i32
    %0 = arith.cmpi eq, %arg2, %c0_i32 : i32
    %1 = arith.extui %0 : i1 to i32
    %c0_i32_0 = arith.constant 0 : i32
    %2 = arith.cmpi ne, %1, %c0_i32_0 : i32
    scf.if %2 {
      %c0 = arith.constant 0 : index
      %c0_4 = arith.constant 0 : index
      %9 = vector.load %arg6[%c0, %c0_4] : memref<1x256xf32, #tpu.memory_space<vmem>>, vector<1x256xf32>
      %10 = vector.shape_cast %9 : vector<1x256xf32> to vector<1x256xf32>
      %11 = vector.broadcast %10 : vector<1x256xf32> to vector<128x256xf32>
      %c0_5 = arith.constant 0 : index
      %c0_6 = arith.constant 0 : index
      %12 = vector.load %arg7[%c0_5, %c0_6] : memref<128x256xf32, #tpu.memory_space<vmem>>, vector<128x256xf32>
      tpu.vector_store %arg7[%c0_5, %c0_6], %11 {strides = array<i32>} : memref<128x256xf32, #tpu.memory_space<vmem>>, vector<128x256xf32>,
    } else {
    }
    %c1_i32 = arith.constant 1 : i32
    %3 = arith.cmpi slt, %arg2, %c1_i32 : i32
    %4 = arith.extui %3 : i1 to i32
    %c0_i32_1 = arith.constant 0 : i32
    %5 = arith.cmpi ne, %4, %c0_i32_1 : i32
    scf.if %5 {
      %c0 = arith.constant 0 : index
      %c0_4 = arith.constant 0 : index
      %9 = vector.load %arg7[%c0, %c0_4] : memref<128x256xf32, #tpu.memory_space<vmem>>, vector<128x256xf32>
      %c0_5 = arith.constant 0 : index
      %c0_6 = arith.constant 0 : index
      %10 = vector.load %arg3[%c0_5, %c0_6] : memref<128x512xf32, #tpu.memory_space<vmem>>, vector<128x512xf32>
      %11 = arith.truncf %10 : vector<128x512xf32> to vector<128x512xbf16>
      %c0_7 = arith.constant 0 : index
      %c0_8 = arith.constant 0 : index
      %12 = vector.load %arg5[%c0_7, %c0_8] : memref<512x256xbf16, #tpu.memory_space<vmem>>, vector<512x256xbf16>
      %cst = arith.constant dense<0.000000e+00> : vector<128x256xf32>
      %13 = tpu.matmul %11, %12, %cst {dimension_numbers = #tpu.dot_dimension_numbers<[1], [0], [0], [1], [0, 0, 1, 1], [], []>} : vector<128x512xbf16>, vector<512x256xbf16>, vector<128x256xf32> -> vector<128x256xf32>
      %14 = arith.addf %9, %13 : vector<128x256xf32>
      %c0_9 = arith.constant 0 : index
      %c0_10 = arith.constant 0 : index
      %15 = vector.load %arg7[%c0_9, %c0_10] : memref<128x256xf32, #tpu.memory_space<vmem>>, vector<128x256xf32>
      tpu.vector_store %arg7[%c0_9, %c0_10], %14 {strides = array<i32>} : memref<128x256xf32, #tpu.memory_space<vmem>>, vector<128x256xf32>,
    } else {
    }
    %c1_i32_2 = arith.constant 1 : i32
    %6 = arith.cmpi sge, %arg2, %c1_i32_2 : i32
    %7 = arith.extui %6 : i1 to i32
    %c0_i32_3 = arith.constant 0 : i32
    %8 = arith.cmpi ne, %7, %c0_i32_3 : i32
    scf.if %8 {
      %c0 = arith.constant 0 : index
      %c0_4 = arith.constant 0 : index
      %9 = vector.load %arg7[%c0, %c0_4] : memref<128x256xf32, #tpu.memory_space<vmem>>, vector<128x256xf32>
      %c0_5 = arith.constant 0 : index
      %c0_6 = arith.constant 0 : index
      %10 = vector.load %arg4[%c0_5, %c0_6] : memref<128x512xf32, #tpu.memory_space<vmem>>, vector<128x512xf32>
      %11 = arith.truncf %10 : vector<128x512xf32> to vector<128x512xbf16>
      %c0_7 = arith.constant 0 : index
      %c0_8 = arith.constant 0 : index
      %12 = vector.load %arg5[%c0_7, %c0_8] : memref<512x256xbf16, #tpu.memory_space<vmem>>, vector<512x256xbf16>
      %cst = arith.constant dense<0.000000e+00> : vector<128x256xf32>
      %13 = tpu.matmul %11, %12, %cst {dimension_numbers = #tpu.dot_dimension_numbers<[1], [0], [0], [1], [0, 0, 1, 1], [], []>} : vector<128x512xbf16>, vector<512x256xbf16>, vector<128x256xf32> -> vector<128x256xf32>
      %14 = arith.addf %9, %13 : vector<128x256xf32>
      %c0_9 = arith.constant 0 : index
      %c0_10 = arith.constant 0 : index
      %15 = vector.load %arg7[%c0_9, %c0_10] : memref<128x256xf32, #tpu.memory_space<vmem>>, vector<128x256xf32>
      tpu.vector_store %arg7[%c0_9, %c0_10], %14 {strides = array<i32>} : memref<128x256xf32, #tpu.memory_space<vmem>>, vector<128x256xf32>,
    } else {
    }
    return
  }
  func.func @transform_0(%arg0: i32, %arg1: i32, %arg2: i32) -> (i32, i32) {
    %c0_i32 = arith.constant 0 : i32
    %0 = arith.minsi %arg2, %c0_i32 : i32
    %c0_i32_0 = arith.constant 0 : i32
    return %arg0, %0 : i32, i32
  }
  func.func @transform_1(%arg0: i32, %arg1: i32, %arg2: i32) -> (i32, i32) {
    %c1_i32 = arith.constant 1 : i32
    %0 = arith.subi %arg2, %c1_i32 : i32
    %c0_i32 = arith.constant 0 : i32
    %1 = arith.maxsi %0, %c0_i32 : i32
    %c0_i32_0 = arith.constant 0 : i32
    return %arg0, %1 : i32, i32
  }
  func.func @transform_2(%arg0: i32, %arg1: i32, %arg2: i32) -> (i32, i32) {
    %c0_i32 = arith.constant 0 : i32
    return %arg2, %arg1 : i32, i32
  }
  func.func @transform_3(%arg0: i32, %arg1: i32, %arg2: i32) -> (i32, i32) {
    %c0_i32 = arith.constant 0 : i32
    %c0_i32_0 = arith.constant 0 : i32
    return %c0_i32, %arg1 : i32, i32
  }
  func.func @transform_4(%arg0: i32, %arg1: i32, %arg2: i32) -> (i32, i32) {
    %c0_i32 = arith.constant 0 : i32
    return %arg0, %arg1 : i32, i32
  }
}

</mosaic_0001>

<llo_original>
// kernel: tpu_custom_call.1
$region0: #{tpu_custom_call.1}
  #allocation0 [shape = 'u32[]', space=smem, size = 0x4, offset = 0x4, fixed_abs, tag = 'smem constant byte address 0x4 - core index']
  #allocation1 [shape = 'u32[144,128]{1,0:T(1,128)}', space=vmem, size = 0x12000, scoped, tag = 'internal scratch']
  %s0 = inlined_call_operand.hbm [shape: f32[128,512], index: 0, kind: input, shape index: {}]
  %s1 = inlined_call_operand.hbm [shape: f32[128,512], index: 1, kind: input, shape index: {}]
  %s2 = inlined_call_operand.hbm [shape: bf16[1024,512], index: 2, kind: input, shape index: {}]
  %s3 = inlined_call_operand.vmem [shape: f32[1,512], index: 3, kind: input, shape index: {}]
  %s4 = inlined_call_operand.hbm [shape: f32[128,512], index: 4, kind: output, shape index: {}]
  %s5 = sld [smem:[#allocation0]]
  $region73: #{tpu_custom_call.1} parent=0
    _
  %s7 = ssub.s32 1, %s5
  %s8 = scalar_select 0, %s7, %s5
  $region1: #{tpu_custom_call.1} parent=0
    #allocation2 [shape = 'u8[524288]{0}', space=vmem, size = 0x80000, scoped, tag = 'input window, operand 0']
    #allocation3 [shape = 's32[2]{0}', space=sflag, size = 0x8, scoped, tag = 'scoped memory for tpu_custom_call.1']
    #allocation4 [shape = 's32[2]{0}', space=sflag, size = 0x8, scoped, tag = 'scoped memory for tpu_custom_call.1']
    #allocation5 [shape = 'u8[524288]{0}', space=vmem, size = 0x80000, scoped, tag = 'input window, operand 1']
    #allocation6 [shape = 's32[2]{0}', space=sflag, size = 0x8, scoped, tag = 'scoped memory for tpu_custom_call.1']
    #allocation7 [shape = 'u8[524288]{0}', space=vmem, size = 0x80000, scoped, tag = 'input window, operand 2']
    #allocation8 [shape = 'u8[262144]{0}', space=vmem, size = 0x40000, scoped, tag = 'output window, operand 0']
    %9 = vsyncpa [#allocation3], 0
    %s10 = scalar_lea.sflag [#allocation3], 1
    %11 = vsyncpa %s10, 0
    %12 = vsyncpa [#allocation6], 0
    %s13 = scalar_lea.sflag [#allocation6], 1
    %14 = vsyncpa %s13, 0
    %15 = vsyncpa [#allocation4], 0
    %s16 = scalar_lea.sflag [#allocation4], 1
    %17 = vsyncpa %s16, 0
    loop: start=0, step=1, limit=6
    $region2: #{tpu_custom_call.1} parent=1 // loop_pre_header
      _
    $region3: #{tpu_custom_call.1} parent=1 // loop_header
      %s19 = sphi 0, %s23
      %p20 = scmp.ge.s32.totalorder %s19, 6
      %s26 = sphi 0, %s45
      %s27 = sphi 0, %s41
      %s28 = sphi 0, %s37
      %s29 = sphi 0, %s26
      %s30 = sphi 0, %s27
      %s31 = sphi 0, %s28
      %s32 = sphi 0, %s29
      %s33 = sphi 0, %s30
      %s34 = sphi 0, %s31
      %s54 = sphi 0, %s56
      %s57 = sphi 0, %s54
      %s58 = sphi 0, %s57
      %s74 = sphi 0, %s58
      %s88 = sphi 0, %s90
      %s91 = sphi 0, %s88
      %s92 = sphi 0, %s91
      %s108 = sphi 0, %s92
      %s116 = sphi 0, %s118
      %s119 = sphi 0, %s116
      %s120 = sphi 0, %s119
      %s136 = sphi 0, %s120
      %s142 = sphi 0, %s144
      %s145 = sphi 0, %s142
      %s146 = sphi 0, %s145
      %s162 = sphi 0, %s146
      %s170 = sphi 0, %s172
      %s173 = sphi 0, %s170
      %s174 = sphi 0, %s173
      %s190 = sphi 0, %s174
    $region4: #{tpu_custom_call.1} parent=1 // loop_header_branch
      %22 = sbr.rel (%p20) target = $region8
    $region5: #{tpu_custom_call.1} parent=1 // loop_body
      %s24 = ssub.s32 %s19, 1
      %s25 = ssub.s32 %s19, 2
      %s35 = sadd.s32 1, %s28
      %p36 = scmp.ge.s32.totalorder %s35, 2
      %s37 = scalar_select %p36, 0, %s35
      %s38 = sadd.s32 1, %s27
      %s39 = scalar_select %p36, %s38, %s27
      %p40 = scmp.ge.s32.totalorder %s39, 2
      %s41 = scalar_select %p40, 0, %s39
      %s42 = sadd.s32 1, %s26
      %s43 = scalar_select %p40, %s42, %s26
      %p44 = scmp.ge.s32.totalorder %s43, 1
      %s45 = scalar_select %p44, 0, %s43
      %p46 = scmp.lt.s32.totalorder %s28, 0
      %s47 = scalar_select %p46, %s28, 0
      %p48 = scmp.lt.s32.totalorder %s37, 0
      %s49 = scalar_select %p48, %s37, 0
      %s50 = ssub.s32 %s26, %s45
      %s51 = ssub.s32 %s47, %s49
      %s52 = sor.u32 %s50, %s51
      %p53 = scmp.eq.s32.totalorder %s52, 0
      %s55 = sadd.s32 %s54, 1
      %s56 = scalar_select %p53, %s54, %s55
      %p59 = pneg %p53
      %p60 = scmp.eq.s32.totalorder %s19, 3
      %p61 = por %p59, %p60
      %p62 = scmp.ne.s32.totalorder %s54, %s57
      %p63 = scmp.eq.s32.totalorder %s19, 0
      %p64 = por %p62, %p63
      %p65 = scmp.ne.s32.totalorder %s54, %s57
      %p66 = scmp.eq.s32.totalorder %s24, 3
      %p67 = por %p65, %p66
      %p68 = scmp.ne.s32.totalorder %s57, %s58
      %p69 = scmp.eq.s32.totalorder %s24, 0
      %p70 = por %p68, %p69
      %p71 = scmp.ne.s32.totalorder %s57, %s58
      %p72 = scmp.eq.s32.totalorder %s25, 3
      %p73 = por %p71, %p72
      %p75 = scmp.ne.s32.totalorder %s58, %s74
      %p76 = scmp.eq.s32.totalorder %s25, 0
      %p77 = por %p75, %p76
      %s78 = ssub.s32 %s28, 1
      %p79 = scmp.gt.s32.totalorder %s78, 0
      %s80 = scalar_select %p79, %s78, 0
      %s81 = ssub.s32 %s37, 1
      %p82 = scmp.gt.s32.totalorder %s81, 0
      %s83 = scalar_select %p82, %s81, 0
      %s84 = ssub.s32 %s26, %s45
      %s85 = ssub.s32 %s80, %s83
      %s86 = sor.u32 %s84, %s85
      %p87 = scmp.eq.s32.totalorder %s86, 0
      %s89 = sadd.s32 %s88, 1
      %s90 = scalar_select %p87, %s88, %s89
      %p93 = pneg %p87
      %p94 = scmp.eq.s32.totalorder %s19, 3
      %p95 = por %p93, %p94
      %p96 = scmp.ne.s32.totalorder %s88, %s91
      %p97 = scmp.eq.s32.totalorder %s19, 0
      %p98 = por %p96, %p97
      %p99 = scmp.ne.s32.totalorder %s88, %s91
      %p100 = scmp.eq.s32.totalorder %s24, 3
      %p101 = por %p99, %p100
      %p102 = scmp.ne.s32.totalorder %s91, %s92
      %p103 = scmp.eq.s32.totalorder %s24, 0
      %p104 = por %p102, %p103
      %p105 = scmp.ne.s32.totalorder %s91, %s92
      %p106 = scmp.eq.s32.totalorder %s25, 3
      %p107 = por %p105, %p106
      %p109 = scmp.ne.s32.totalorder %s92, %s108
      %p110 = scmp.eq.s32.totalorder %s25, 0
      %p111 = por %p109, %p110
      %s112 = ssub.s32 %s28, %s37
      %s113 = ssub.s32 %s27, %s41
      %s114 = sor.u32 %s112, %s113
      %p115 = scmp.eq.s32.totalorder %s114, 0
      %s117 = sadd.s32 %s116, 1
      %s118 = scalar_select %p115, %s116, %s117
      %p121 = pneg %p115
      %p122 = scmp.eq.s32.totalorder %s19, 3
      %p123 = por %p121, %p122
      %p124 = scmp.ne.s32.totalorder %s116, %s119
      %p125 = scmp.eq.s32.totalorder %s19, 0
      %p126 = por %p124, %p125
      %p127 = scmp.ne.s32.totalorder %s116, %s119
      %p128 = scmp.eq.s32.totalorder %s24, 3
      %p129 = por %p127, %p128
      %p130 = scmp.ne.s32.totalorder %s119, %s120
      %p131 = scmp.eq.s32.totalorder %s24, 0
      %p132 = por %p130, %p131
      %p133 = scmp.ne.s32.totalorder %s119, %s120
      %p134 = scmp.eq.s32.totalorder %s25, 3
      %p135 = por %p133, %p134
      %p137 = scmp.ne.s32.totalorder %s120, %s136
      %p138 = scmp.eq.s32.totalorder %s25, 0
      %p139 = por %p137, %p138
      %s140 = ssub.s32 %s27, %s41
      %p141 = scmp.eq.s32.totalorder %s140, 0
      %s143 = sadd.s32 %s142, 1
      %s144 = scalar_select %p141, %s142, %s143
      %p147 = pneg %p141
      %p148 = scmp.eq.s32.totalorder %s19, 3
      %p149 = por %p147, %p148
      %p150 = scmp.ne.s32.totalorder %s142, %s145
      %p151 = scmp.eq.s32.totalorder %s19, 0
      %p152 = por %p150, %p151
      %p153 = scmp.ne.s32.totalorder %s142, %s145
      %p154 = scmp.eq.s32.totalorder %s24, 3
      %p155 = por %p153, %p154
      %p156 = scmp.ne.s32.totalorder %s145, %s146
      %p157 = scmp.eq.s32.totalorder %s24, 0
      %p158 = por %p156, %p157
      %p159 = scmp.ne.s32.totalorder %s145, %s146
      %p160 = scmp.eq.s32.totalorder %s25, 3
      %p161 = por %p159, %p160
      %p163 = scmp.ne.s32.totalorder %s146, %s162
      %p164 = scmp.eq.s32.totalorder %s25, 0
      %p165 = por %p163, %p164
      %s166 = ssub.s32 %s26, %s45
      %s167 = ssub.s32 %s27, %s41
      %s168 = sor.u32 %s166, %s167
      %p169 = scmp.eq.s32.totalorder %s168, 0
      %s171 = sadd.s32 %s170, 1
      %s172 = scalar_select %p169, %s170, %s171
      %p175 = pneg %p169
      %p176 = scmp.eq.s32.totalorder %s19, 3
      %p177 = por %p175, %p176
      %p178 = scmp.ne.s32.totalorder %s170, %s173
      %p179 = scmp.eq.s32.totalorder %s19, 0
      %p180 = por %p178, %p179
      %p181 = scmp.ne.s32.totalorder %s170, %s173
      %p182 = scmp.eq.s32.totalorder %s24, 3
      %p183 = por %p181, %p182
      %p184 = scmp.ne.s32.totalorder %s173, %s174
      %p185 = scmp.eq.s32.totalorder %s24, 0
      %p186 = por %p184, %p185
      %p187 = scmp.ne.s32.totalorder %s173, %s174
      %p188 = scmp.eq.s32.totalorder %s25, 3
      %p189 = por %p187, %p188
      %p191 = scmp.ne.s32.totalorder %s174, %s190
      %p192 = scmp.eq.s32.totalorder %s25, 0
      %p193 = por %p191, %p192
      %p194 = scmp.le.s32.totalorder 1, %s19
      %p195 = scmp.lt.s32.totalorder %s19, 5
      %p196 = pnand %p194, %p195
      %p197 = pneg %p196
      // Predicated region
      $region9: #{tpu_custom_call.1} parent=5 // pred_check
        _
      $region10: #{tpu_custom_call.1} parent=5 // pred_check_branch
        %199 = sbr.rel (%p196) target = $region12
      $region11: #{tpu_custom_call.1} parent=5 // pred_region
        %s200 = ssub.s32 %s19, 1
      $region12: #{tpu_custom_call.1} parent=5 // pred_fallthru
        _
      %p201 = scmp.lt.s32.totalorder %s19, 4
      // Predicated region
      $region13: #{tpu_custom_call.1} parent=5 // pred_check
        %p202 = pneg %p201
      $region14: #{tpu_custom_call.1} parent=5 // pred_check_branch
        %204 = sbr.rel (%p202) target = $region16
      $region15: #{tpu_custom_call.1} parent=5 // pred_region
        // Predicated region
        $region17: #{tpu_custom_call.1} parent=15 // pred_check
          %p205 = pneg %p64
        $region18: #{tpu_custom_call.1} parent=15 // pred_check_branch
          %207 = sbr.rel (%p205) target = $region20
        $region19: #{tpu_custom_call.1} parent=15 // pred_region
          %s208 = sand.u32 %s54, 1
          %s209 = scalar_lea.sflag [#allocation3], %s208
          %s210 = sand.u32 %s54, 1
          %s211 = smul.addr %s210, 512
          %s212 = scalar_lea.vmem [#allocation2], %s211
          %p213 = scmp.lt.s32.totalorder %s28, 0
          %s214 = scalar_select %p213, %s28, 0
          %s215 = smul.u32 16, %s26
          %s216 = smul.u32 4, %s214
          %s218 = ssub.s32 8192, 8192
          %219 = vsyncadd %s209, %s218
          %s220 = smul.addr %s215, 4
          %s221 = sadd.s32 %s216, %s220
          %s222 = smul.addr %s221, 128
          %s223 = scalar_lea.hbm %s0, %s222
          %s224 = sshll.u32 %s212, 4
          %s225 = int_to_ptr.vmem [resolvable:$true] %s224
          %230 = dma.hbm_to_vmem [thread:$0]  %s223, 8192, %s225, %s209, 512, 512, 32
        $region20: #{tpu_custom_call.1} parent=15 // pred_fallthru
          _
        // Predicated region
        $region21: #{tpu_custom_call.1} parent=15 // pred_check
          %p231 = pneg %p98
        $region22: #{tpu_custom_call.1} parent=15 // pred_check_branch
          %233 = sbr.rel (%p231) target = $region24
        $region23: #{tpu_custom_call.1} parent=15 // pred_region
          %s234 = sand.u32 %s19, 1
          %s235 = scalar_lea.sflag [#allocation6], %s234
          %s236 = sand.u32 %s88, 1
          %s237 = smul.addr %s236, 512
          %s238 = scalar_lea.vmem [#allocation5], %s237
          %s239 = ssub.s32 %s28, 1
          %p240 = scmp.gt.s32.totalorder %s239, 0
          %s241 = scalar_select %p240, %s239, 0
          %s242 = smul.u32 16, %s26
          %s243 = smul.u32 4, %s241
          %s245 = ssub.s32 8192, 8192
          %246 = vsyncadd %s235, %s245
          %s247 = smul.addr %s242, 4
          %s248 = sadd.s32 %s243, %s247
          %s249 = smul.addr %s248, 128
          %s250 = scalar_lea.hbm %s1, %s249
          %s251 = sshll.u32 %s238, 4
          %s252 = int_to_ptr.vmem [resolvable:$true] %s251
          %257 = dma.hbm_to_vmem [thread:$0]  %s250, 8192, %s252, %s235, 512, 512, 32
        $region24: #{tpu_custom_call.1} parent=15 // pred_fallthru
          _
        // Predicated region
        $region25: #{tpu_custom_call.1} parent=15 // pred_check
          %p258 = pneg %p126
        $region26: #{tpu_custom_call.1} parent=15 // pred_check_branch
          %260 = sbr.rel (%p258) target = $region28
        $region27: #{tpu_custom_call.1} parent=15 // pred_region
          %s261 = sand.u32 %s19, 1
          %s262 = scalar_lea.sflag [#allocation6], %s261
          %s263 = sand.u32 %s116, 1
          %s264 = smul.addr %s263, 512
          %s265 = scalar_lea.vmem [#allocation7], %s264
          %s266 = smul.u32 64, %s28
          %s267 = smul.u32 2, %s27
          %s269 = ssub.s32 8192, 8192
          %270 = vsyncadd %s262, %s269
          %s271 = smul.addr %s266, 4
          %s272 = sadd.s32 %s267, %s271
          %s273 = smul.addr %s272, 64
          %s274 = scalar_lea.hbm %s2, %s273
          %s275 = sshll.u32 %s265, 4
          %s276 = int_to_ptr.vmem [resolvable:$true] %s275
          %281 = dma.hbm_to_vmem [thread:$0]  %s274, 8192, %s276, %s262, 256, 128, 8
        $region28: #{tpu_custom_call.1} parent=15 // pred_fallthru
          _
        // Predicated region
        $region29: #{tpu_custom_call.1} parent=15 // pred_check
          %p282 = pneg %p152
        $region30: #{tpu_custom_call.1} parent=15 // pred_check_branch
          %284 = sbr.rel (%p282) target = $region32
        $region31: #{tpu_custom_call.1} parent=15 // pred_region
          %s285 = smul.u32 2, %s27
          %p286 = scmp.lt.s32.totalorder %s285, 3
          %s287 = scalar_select %p286, %s285, 3
          %s288 = scalar_lea.vmem %s3, %s287
          %s289 = smul.u32 2, %s27
        $region32: #{tpu_custom_call.1} parent=15 // pred_fallthru
          _
      $region16: #{tpu_custom_call.1} parent=5 // pred_fallthru
        _
      %p290 = scmp.le.s32.totalorder 1, %s19
      %p291 = scmp.lt.s32.totalorder %s19, 5
      %p292 = pnand %p290, %p291
      %p293 = pneg %p292
      // Predicated region
      $region33: #{tpu_custom_call.1} parent=5 // pred_check
        _
      $region34: #{tpu_custom_call.1} parent=5 // pred_check_branch
        %295 = sbr.rel (%p292) target = $region36
      $region35: #{tpu_custom_call.1} parent=5 // pred_region
        %s296 = ssub.s32 %s19, 1
        %s297 = sand.u32 %s57, 1
        %s298 = scalar_lea.sflag [#allocation3], %s297
        %s299 = sand.u32 %s57, 1
        %s300 = smul.addr %s299, 512
        %s301 = scalar_lea.vmem [#allocation2], %s300
        // Predicated region
        $region37: #{tpu_custom_call.1} parent=35 // pred_check
          %p302 = pneg %p70
        $region38: #{tpu_custom_call.1} parent=35 // pred_check_branch
          %304 = sbr.rel (%p302) target = $region40
        $region39: #{tpu_custom_call.1} parent=35 // pred_region
          %305 = dma.done %s298, 8192
        $region40: #{tpu_custom_call.1} parent=35 // pred_fallthru
          _
        %s306 = sand.u32 %s24, 1
        %s307 = scalar_lea.sflag [#allocation6], %s306
        %s308 = sand.u32 %s91, 1
        %s309 = smul.addr %s308, 512
        %s310 = scalar_lea.vmem [#allocation5], %s309
        // Predicated region
        $region41: #{tpu_custom_call.1} parent=35 // pred_check
          %p311 = pneg %p104
        $region42: #{tpu_custom_call.1} parent=35 // pred_check_branch
          %313 = sbr.rel (%p311) target = $region44
        $region43: #{tpu_custom_call.1} parent=35 // pred_region
          %314 = dma.done %s307, 8192
        $region44: #{tpu_custom_call.1} parent=35 // pred_fallthru
          _
        %s315 = sand.u32 %s24, 1
        %s316 = scalar_lea.sflag [#allocation6], %s315
        %s317 = sand.u32 %s119, 1
        %s318 = smul.addr %s317, 512
        %s319 = scalar_lea.vmem [#allocation7], %s318
        // Predicated region
        $region45: #{tpu_custom_call.1} parent=35 // pred_check
          %p320 = pneg %p132
        $region46: #{tpu_custom_call.1} parent=35 // pred_check_branch
          %322 = sbr.rel (%p320) target = $region48
        $region47: #{tpu_custom_call.1} parent=35 // pred_region
          %323 = dma.done %s316, 8192
        $region48: #{tpu_custom_call.1} parent=35 // pred_fallthru
          _
        %s324 = sand.u32 %s57, 1
        %s325 = scalar_lea.sflag [#allocation3], %s324
        %s326 = sand.u32 %s57, 1
        %s327 = smul.addr %s326, 512
        %s328 = scalar_lea.vmem [#allocation2], %s327
        %p329 = pneg %p70
        %p330 = pneg %p67
        %s331 = sand.u32 %s24, 1
        %s332 = scalar_lea.sflag [#allocation6], %s331
        %s333 = sand.u32 %s91, 1
        %s334 = smul.addr %s333, 512
        %s335 = scalar_lea.vmem [#allocation5], %s334
        %p336 = pneg %p104
        %p337 = pneg %p101
        %s338 = sand.u32 %s24, 1
        %s339 = scalar_lea.sflag [#allocation6], %s338
        %s340 = sand.u32 %s119, 1
        %s341 = smul.addr %s340, 512
        %s342 = scalar_lea.vmem [#allocation7], %s341
        %p343 = pneg %p132
        %p344 = pneg %p129
        %s345 = smul.u32 2, %s30
        %p346 = scmp.lt.s32.totalorder %s345, 3
        %s347 = scalar_select %p346, %s345, 3
        %s348 = scalar_lea.vmem %s3, %s347
        %p349 = pneg %p158
        %p350 = pneg %p155
        %p351 = pneg %p186
        %p352 = pneg %p183
        %s353 = sand.u32 %s173, 1
        %s354 = scalar_lea.sflag [#allocation4], %s353
        %s355 = sand.u32 %s173, 1
        %s356 = smul.addr %s355, 256
        %s357 = scalar_lea.vmem [#allocation8], %s356
        %p358 = scmp.lt.s32.totalorder %s31, 0
        %s359 = scalar_select %p358, %s31, 0
        %s360 = smul.u32 16, %s29
        %s361 = smul.u32 4, %s359
        %s362 = ssub.s32 %s31, 1
        %p363 = scmp.gt.s32.totalorder %s362, 0
        %s364 = scalar_select %p363, %s362, 0
        %s365 = smul.u32 16, %s29
        %s366 = smul.u32 4, %s364
        %s367 = smul.u32 64, %s31
        %s368 = smul.u32 2, %s30
        %s369 = smul.u32 2, %s30
        %p370 = scmp.lt.s32.totalorder %s369, 3
        %s371 = scalar_select %p370, %s369, 3
        %s372 = scalar_lea.vmem %s3, %s371
        %s373 = smul.u32 2, %s30
        %s374 = smul.u32 16, %s29
        %s375 = smul.u32 2, %s30
        %p376 = scmp.eq.s32.totalorder %s31, 0
        // Predicated region
        $region49: #{tpu_custom_call.1} parent=35 // pred_check
          %p377 = pneg %p376
        $region50: #{tpu_custom_call.1} parent=35 // pred_check_branch
          %379 = sbr.rel (%p377) target = $region52
        $region51: #{tpu_custom_call.1} parent=35 // pred_region
          %v380 = vld [vmem:[%s372] sm:$0x3]
          %v382 = vlaneseq
          %v383 = vshrl.u32 %v382, 7
          %v384 = vsub.s32 0, %v383
          %v385 = vrot.slane %v380, %v384
          %v386 = vlaneseq
          %v387 = vshrl.u32 %v386, 7
          %v388 = vsub.s32 1, %v387
          %v389 = vrot.slane %v380, %v388
          %392 = vst [vmem:[%s357] sm:$0xff] %v385
          %393 = vst [vmem:[%s357 + $0x8] sm:$0xff] %v389
          %394 = vst [vmem:[%s357 + $0x10] sm:$0xff] %v385
          %395 = vst [vmem:[%s357 + $0x18] sm:$0xff] %v389
          %396 = vst [vmem:[%s357 + $0x20] sm:$0xff] %v385
          %397 = vst [vmem:[%s357 + $0x28] sm:$0xff] %v389
          %398 = vst [vmem:[%s357 + $0x30] sm:$0xff] %v385
          %399 = vst [vmem:[%s357 + $0x38] sm:$0xff] %v389
          %400 = vst [vmem:[%s357 + $0x40] sm:$0xff] %v385
          %401 = vst [vmem:[%s357 + $0x48] sm:$0xff] %v389
          %402 = vst [vmem:[%s357 + $0x50] sm:$0xff] %v385
          %403 = vst [vmem:[%s357 + $0x58] sm:$0xff] %v389
          %404 = vst [vmem:[%s357 + $0x60] sm:$0xff] %v385
          %405 = vst [vmem:[%s357 + $0x68] sm:$0xff] %v389
          %406 = vst [vmem:[%s357 + $0x70] sm:$0xff] %v385
          %407 = vst [vmem:[%s357 + $0x78] sm:$0xff] %v389
          %408 = vst [vmem:[%s357 + $0x80] sm:$0xff] %v385
          %409 = vst [vmem:[%s357 + $0x88] sm:$0xff] %v389
          %410 = vst [vmem:[%s357 + $0x90] sm:$0xff] %v385
          %411 = vst [vmem:[%s357 + $0x98] sm:$0xff] %v389
          %412 = vst [vmem:[%s357 + $0xa0] sm:$0xff] %v385
          %413 = vst [vmem:[%s357 + $0xa8] sm:$0xff] %v389
          %414 = vst [vmem:[%s357 + $0xb0] sm:$0xff] %v385
          %415 = vst [vmem:[%s357 + $0xb8] sm:$0xff] %v389
          %416 = vst [vmem:[%s357 + $0xc0] sm:$0xff] %v385
          %417 = vst [vmem:[%s357 + $0xc8] sm:$0xff] %v389
          %418 = vst [vmem:[%s357 + $0xd0] sm:$0xff] %v385
          %419 = vst [vmem:[%s357 + $0xd8] sm:$0xff] %v389
          %420 = vst [vmem:[%s357 + $0xe0] sm:$0xff] %v385
          %421 = vst [vmem:[%s357 + $0xe8] sm:$0xff] %v389
          %422 = vst [vmem:[%s357 + $0xf0] sm:$0xff] %v385
          %423 = vst [vmem:[%s357 + $0xf8] sm:$0xff] %v389
        $region52: #{tpu_custom_call.1} parent=35 // pred_fallthru
          _
        %p424 = scmp.lt.s32.totalorder %s31, 1
        // Predicated region
        $region53: #{tpu_custom_call.1} parent=35 // pred_check
          %p425 = pneg %p424
        $region54: #{tpu_custom_call.1} parent=35 // pred_check_branch
          %427 = sbr.rel (%p425) target = $region56
        $region55: #{tpu_custom_call.1} parent=35 // pred_region
          %v428 = vld [vmem:[%s357] sm:$0xff]
          %v429 = vld [vmem:[%s357 + $0x8] sm:$0xff]
          %v430 = vld [vmem:[%s357 + $0x10] sm:$0xff]
          %v431 = vld [vmem:[%s357 + $0x18] sm:$0xff]
          %v432 = vld [vmem:[%s357 + $0x20] sm:$0xff]
          %v433 = vld [vmem:[%s357 + $0x28] sm:$0xff]
          %v434 = vld [vmem:[%s357 + $0x30] sm:$0xff]
          %v435 = vld [vmem:[%s357 + $0x38] sm:$0xff]
          %v436 = vld [vmem:[%s357 + $0x40] sm:$0xff]
          %v437 = vld [vmem:[%s357 + $0x48] sm:$0xff]
          %v438 = vld [vmem:[%s357 + $0x50] sm:$0xff]
          %v439 = vld [vmem:[%s357 + $0x58] sm:$0xff]
          %v440 = vld [vmem:[%s357 + $0x60] sm:$0xff]
          %v441 = vld [vmem:[%s357 + $0x68] sm:$0xff]
          %v442 = vld [vmem:[%s357 + $0x70] sm:$0xff]
          %v443 = vld [vmem:[%s357 + $0x78] sm:$0xff]
          %v444 = vld [vmem:[%s357 + $0x80] sm:$0xff]
          %v445 = vld [vmem:[%s357 + $0x88] sm:$0xff]
          %v446 = vld [vmem:[%s357 + $0x90] sm:$0xff]
          %v447 = vld [vmem:[%s357 + $0x98] sm:$0xff]
          %v448 = vld [vmem:[%s357 + $0xa0] sm:$0xff]
          %v449 = vld [vmem:[%s357 + $0xa8] sm:$0xff]
          %v450 = vld [vmem:[%s357 + $0xb0] sm:$0xff]
          %v451 = vld [vmem:[%s357 + $0xb8] sm:$0xff]
          %v452 = vld [vmem:[%s357 + $0xc0] sm:$0xff]
          %v453 = vld [vmem:[%s357 + $0xc8] sm:$0xff]
          %v454 = vld [vmem:[%s357 + $0xd0] sm:$0xff]
          %v455 = vld [vmem:[%s357 + $0xd8] sm:$0xff]
          %v456 = vld [vmem:[%s357 + $0xe0] sm:$0xff]
          %v457 = vld [vmem:[%s357 + $0xe8] sm:$0xff]
          %v458 = vld [vmem:[%s357 + $0xf0] sm:$0xff]
          %v459 = vld [vmem:[%s357 + $0xf8] sm:$0xff]
          %v460 = vld [vmem:[%s301] sm:$0xff]
          %v461 = vld [vmem:[%s301 + $0x8] sm:$0xff]
          %v462 = vld [vmem:[%s301 + $0x10] sm:$0xff]
          %v463 = vld [vmem:[%s301 + $0x18] sm:$0xff]
          %v464 = vld [vmem:[%s301 + $0x20] sm:$0xff]
          %v465 = vld [vmem:[%s301 + $0x28] sm:$0xff]
          %v466 = vld [vmem:[%s301 + $0x30] sm:$0xff]
          %v467 = vld [vmem:[%s301 + $0x38] sm:$0xff]
          %v468 = vld [vmem:[%s301 + $0x40] sm:$0xff]
          %v469 = vld [vmem:[%s301 + $0x48] sm:$0xff]
          %v470 = vld [vmem:[%s301 + $0x50] sm:$0xff]
          %v471 = vld [vmem:[%s301 + $0x58] sm:$0xff]
          %v472 = vld [vmem:[%s301 + $0x60] sm:$0xff]
          %v473 = vld [vmem:[%s301 + $0x68] sm:$0xff]
          %v474 = vld [vmem:[%s301 + $0x70] sm:$0xff]
          %v475 = vld [vmem:[%s301 + $0x78] sm:$0xff]
          %v476 = vld [vmem:[%s301 + $0x80] sm:$0xff]
          %v477 = vld [vmem:[%s301 + $0x88] sm:$0xff]
          %v478 = vld [vmem:[%s301 + $0x90] sm:$0xff]
          %v479 = vld [vmem:[%s301 + $0x98] sm:$0xff]
          %v480 = vld [vmem:[%s301 + $0xa0] sm:$0xff]
          %v481 = vld [vmem:[%s301 + $0xa8] sm:$0xff]
          %v482 = vld [vmem:[%s301 + $0xb0] sm:$0xff]
          %v483 = vld [vmem:[%s301 + $0xb8] sm:$0xff]
          %v484 = vld [vmem:[%s301 + $0xc0] sm:$0xff]
          %v485 = vld [vmem:[%s301 + $0xc8] sm:$0xff]
          %v486 = vld [vmem:[%s301 + $0xd0] sm:$0xff]
          %v487 = vld [vmem:[%s301 + $0xd8] sm:$0xff]
          %v488 = vld [vmem:[%s301 + $0xe0] sm:$0xff]
          %v489 = vld [vmem:[%s301 + $0xe8] sm:$0xff]
          %v490 = vld [vmem:[%s301 + $0xf0] sm:$0xff]
          %v491 = vld [vmem:[%s301 + $0xf8] sm:$0xff]
          %v492 = vld [vmem:[%s301 + $0x100] sm:$0xff]
          %v493 = vld [vmem:[%s301 + $0x108] sm:$0xff]
          %v494 = vld [vmem:[%s301 + $0x110] sm:$0xff]
          %v495 = vld [vmem:[%s301 + $0x118] sm:$0xff]
          %v496 = vld [vmem:[%s301 + $0x120] sm:$0xff]
          %v497 = vld [vmem:[%s301 + $0x128] sm:$0xff]
          %v498 = vld [vmem:[%s301 + $0x130] sm:$0xff]
          %v499 = vld [vmem:[%s301 + $0x138] sm:$0xff]
          %v500 = vld [vmem:[%s301 + $0x140] sm:$0xff]
          %v501 = vld [vmem:[%s301 + $0x148] sm:$0xff]
          %v502 = vld [vmem:[%s301 + $0x150] sm:$0xff]
          %v503 = vld [vmem:[%s301 + $0x158] sm:$0xff]
          %v504 = vld [vmem:[%s301 + $0x160] sm:$0xff]
          %v505 = vld [vmem:[%s301 + $0x168] sm:$0xff]
          %v506 = vld [vmem:[%s301 + $0x170] sm:$0xff]
          %v507 = vld [vmem:[%s301 + $0x178] sm:$0xff]
          %v508 = vld [vmem:[%s301 + $0x180] sm:$0xff]
          %v509 = vld [vmem:[%s301 + $0x188] sm:$0xff]
          %v510 = vld [vmem:[%s301 + $0x190] sm:$0xff]
          %v511 = vld [vmem:[%s301 + $0x198] sm:$0xff]
          %v512 = vld [vmem:[%s301 + $0x1a0] sm:$0xff]
          %v513 = vld [vmem:[%s301 + $0x1a8] sm:$0xff]
          %v514 = vld [vmem:[%s301 + $0x1b0] sm:$0xff]
          %v515 = vld [vmem:[%s301 + $0x1b8] sm:$0xff]
          %v516 = vld [vmem:[%s301 + $0x1c0] sm:$0xff]
          %v517 = vld [vmem:[%s301 + $0x1c8] sm:$0xff]
          %v518 = vld [vmem:[%s301 + $0x1d0] sm:$0xff]
          %v519 = vld [vmem:[%s301 + $0x1d8] sm:$0xff]
          %v520 = vld [vmem:[%s301 + $0x1e0] sm:$0xff]
          %v521 = vld [vmem:[%s301 + $0x1e8] sm:$0xff]
          %v522 = vld [vmem:[%s301 + $0x1f0] sm:$0xff]
          %v523 = vld [vmem:[%s301 + $0x1f8] sm:$0xff]
          %v524 = vpack.c.bf16 %v464, %v460
          %v525 = vpack.c.bf16 %v465, %v461
          %v526 = vpack.c.bf16 %v466, %v462
          %v527 = vpack.c.bf16 %v467, %v463
          %v528 = vpack.c.bf16 %v472, %v468
          %v529 = vpack.c.bf16 %v473, %v469
          %v530 = vpack.c.bf16 %v474, %v470
          %v531 = vpack.c.bf16 %v475, %v471
          %v532 = vpack.c.bf16 %v480, %v476
          %v533 = vpack.c.bf16 %v481, %v477
          %v534 = vpack.c.bf16 %v482, %v478
          %v535 = vpack.c.bf16 %v483, %v479
          %v536 = vpack.c.bf16 %v488, %v484
          %v537 = vpack.c.bf16 %v489, %v485
          %v538 = vpack.c.bf16 %v490, %v486
          %v539 = vpack.c.bf16 %v491, %v487
          %v540 = vpack.c.bf16 %v496, %v492
          %v541 = vpack.c.bf16 %v497, %v493
          %v542 = vpack.c.bf16 %v498, %v494
          %v543 = vpack.c.bf16 %v499, %v495
          %v544 = vpack.c.bf16 %v504, %v500
          %v545 = vpack.c.bf16 %v505, %v501
          %v546 = vpack.c.bf16 %v506, %v502
          %v547 = vpack.c.bf16 %v507, %v503
          %v548 = vpack.c.bf16 %v512, %v508
          %v549 = vpack.c.bf16 %v513, %v509
          %v550 = vpack.c.bf16 %v514, %v510
          %v551 = vpack.c.bf16 %v515, %v511
          %v552 = vpack.c.bf16 %v520, %v516
          %v553 = vpack.c.bf16 %v521, %v517
          %v554 = vpack.c.bf16 %v522, %v518
          %v555 = vpack.c.bf16 %v523, %v519
          %v556 = vld [vmem:[%s319] sm:$0xff]
          %v557 = vld [vmem:[%s319 + $0x8] sm:$0xff]
          %v558 = vld [vmem:[%s319 + $0x10] sm:$0xff]
          %v559 = vld [vmem:[%s319 + $0x18] sm:$0xff]
          %v560 = vld [vmem:[%s319 + $0x20] sm:$0xff]
          %v561 = vld [vmem:[%s319 + $0x28] sm:$0xff]
          %v562 = vld [vmem:[%s319 + $0x30] sm:$0xff]
          %v563 = vld [vmem:[%s319 + $0x38] sm:$0xff]
          %v564 = vld [vmem:[%s319 + $0x40] sm:$0xff]
          %v565 = vld [vmem:[%s319 + $0x48] sm:$0xff]
          %v566 = vld [vmem:[%s319 + $0x50] sm:$0xff]
          %v567 = vld [vmem:[%s319 + $0x58] sm:$0xff]
          %v568 = vld [vmem:[%s319 + $0x60] sm:$0xff]
          %v569 = vld [vmem:[%s319 + $0x68] sm:$0xff]
          %v570 = vld [vmem:[%s319 + $0x70] sm:$0xff]
          %v571 = vld [vmem:[%s319 + $0x78] sm:$0xff]
          %v572 = vld [vmem:[%s319 + $0x80] sm:$0xff]
          %v573 = vld [vmem:[%s319 + $0x88] sm:$0xff]
          %v574 = vld [vmem:[%s319 + $0x90] sm:$0xff]
          %v575 = vld [vmem:[%s319 + $0x98] sm:$0xff]
          %v576 = vld [vmem:[%s319 + $0xa0] sm:$0xff]
          %v577 = vld [vmem:[%s319 + $0xa8] sm:$0xff]
          %v578 = vld [vmem:[%s319 + $0xb0] sm:$0xff]
          %v579 = vld [vmem:[%s319 + $0xb8] sm:$0xff]
          %v580 = vld [vmem:[%s319 + $0xc0] sm:$0xff]
          %v581 = vld [vmem:[%s319 + $0xc8] sm:$0xff]
          %v582 = vld [vmem:[%s319 + $0xd0] sm:$0xff]
          %v583 = vld [vmem:[%s319 + $0xd8] sm:$0xff]
          %v584 = vld [vmem:[%s319 + $0xe0] sm:$0xff]
          %v585 = vld [vmem:[%s319 + $0xe8] sm:$0xff]
          %v586 = vld [vmem:[%s319 + $0xf0] sm:$0xff]
          %v587 = vld [vmem:[%s319 + $0xf8] sm:$0xff]
          %v588 = vld [vmem:[%s319 + $0x100] sm:$0xff]
          %v589 = vld [vmem:[%s319 + $0x108] sm:$0xff]
          %v590 = vld [vmem:[%s319 + $0x110] sm:$0xff]
          %v591 = vld [vmem:[%s319 + $0x118] sm:$0xff]
          %v592 = vld [vmem:[%s319 + $0x120] sm:$0xff]
          %v593 = vld [vmem:[%s319 + $0x128] sm:$0xff]
          %v594 = vld [vmem:[%s319 + $0x130] sm:$0xff]
          %v595 = vld [vmem:[%s319 + $0x138] sm:$0xff]
          %v596 = vld [vmem:[%s319 + $0x140] sm:$0xff]
          %v597 = vld [vmem:[%s319 + $0x148] sm:$0xff]
          %v598 = vld [vmem:[%s319 + $0x150] sm:$0xff]
          %v599 = vld [vmem:[%s319 + $0x158] sm:$0xff]
          %v600 = vld [vmem:[%s319 + $0x160] sm:$0xff]
          %v601 = vld [vmem:[%s319 + $0x168] sm:$0xff]
          %v602 = vld [vmem:[%s319 + $0x170] sm:$0xff]
          %v603 = vld [vmem:[%s319 + $0x178] sm:$0xff]
          %v604 = vld [vmem:[%s319 + $0x180] sm:$0xff]
          %v605 = vld [vmem:[%s319 + $0x188] sm:$0xff]
          %v606 = vld [vmem:[%s319 + $0x190] sm:$0xff]
          %v607 = vld [vmem:[%s319 + $0x198] sm:$0xff]
          %v608 = vld [vmem:[%s319 + $0x1a0] sm:$0xff]
          %v609 = vld [vmem:[%s319 + $0x1a8] sm:$0xff]
          %v610 = vld [vmem:[%s319 + $0x1b0] sm:$0xff]
          %v611 = vld [vmem:[%s319 + $0x1b8] sm:$0xff]
          %v612 = vld [vmem:[%s319 + $0x1c0] sm:$0xff]
          %v613 = vld [vmem:[%s319 + $0x1c8] sm:$0xff]
          %v614 = vld [vmem:[%s319 + $0x1d0] sm:$0xff]
          %v615 = vld [vmem:[%s319 + $0x1d8] sm:$0xff]
          %v616 = vld [vmem:[%s319 + $0x1e0] sm:$0xff]
          %v617 = vld [vmem:[%s319 + $0x1e8] sm:$0xff]
          %v618 = vld [vmem:[%s319 + $0x1f0] sm:$0xff]
          %v619 = vld [vmem:[%s319 + $0x1f8] sm:$0xff]
          %v684 = vunpack.c.l.b16 %v556
          %v685 = vunpack.c.h.b16 %v556
          %v686 = vunpack.c.l.b16 %v557
          %v687 = vunpack.c.h.b16 %v557
          %v688 = vunpack.c.l.b16 %v558
          %v689 = vunpack.c.h.b16 %v558
          %v690 = vunpack.c.l.b16 %v559
          %v691 = vunpack.c.h.b16 %v559
          %v692 = vunpack.c.l.b16 %v560
          %v693 = vunpack.c.h.b16 %v560
          %v694 = vunpack.c.l.b16 %v561
          %v695 = vunpack.c.h.b16 %v561
          %v696 = vunpack.c.l.b16 %v562
          %v697 = vunpack.c.h.b16 %v562
          %v698 = vunpack.c.l.b16 %v563
          %v699 = vunpack.c.h.b16 %v563
          %v700 = vunpack.c.l.b16 %v564
          %v701 = vunpack.c.h.b16 %v564
          %v702 = vunpack.c.l.b16 %v565
          %v703 = vunpack.c.h.b16 %v565
          %v704 = vunpack.c.l.b16 %v566
          %v705 = vunpack.c.h.b16 %v566
          %v706 = vunpack.c.l.b16 %v567
          %v707 = vunpack.c.h.b16 %v567
          %v708 = vunpack.c.l.b16 %v568
          %v709 = vunpack.c.h.b16 %v568
          %v710 = vunpack.c.l.b16 %v569
          %v711 = vunpack.c.h.b16 %v569
          %v712 = vunpack.c.l.b16 %v570
          %v713 = vunpack.c.h.b16 %v570
          %v714 = vunpack.c.l.b16 %v571
          %v715 = vunpack.c.h.b16 %v571
          %v716 = vunpack.c.l.b16 %v572
          %v717 = vunpack.c.h.b16 %v572
          %v718 = vunpack.c.l.b16 %v573
          %v719 = vunpack.c.h.b16 %v573
          %v720 = vunpack.c.l.b16 %v574
          %v721 = vunpack.c.h.b16 %v574
          %v722 = vunpack.c.l.b16 %v575
          %v723 = vunpack.c.h.b16 %v575
          %v724 = vunpack.c.l.b16 %v576
          %v725 = vunpack.c.h.b16 %v576
          %v726 = vunpack.c.l.b16 %v577
          %v727 = vunpack.c.h.b16 %v577
          %v728 = vunpack.c.l.b16 %v578
          %v729 = vunpack.c.h.b16 %v578
          %v730 = vunpack.c.l.b16 %v579
          %v731 = vunpack.c.h.b16 %v579
          %v732 = vunpack.c.l.b16 %v580
          %v733 = vunpack.c.h.b16 %v580
          %v734 = vunpack.c.l.b16 %v581
          %v735 = vunpack.c.h.b16 %v581
          %v736 = vunpack.c.l.b16 %v582
          %v737 = vunpack.c.h.b16 %v582
          %v738 = vunpack.c.l.b16 %v583
          %v739 = vunpack.c.h.b16 %v583
          %v740 = vunpack.c.l.b16 %v584
          %v741 = vunpack.c.h.b16 %v584
          %v742 = vunpack.c.l.b16 %v585
          %v743 = vunpack.c.h.b16 %v585
          %v744 = vunpack.c.l.b16 %v586
          %v745 = vunpack.c.h.b16 %v586
          %v746 = vunpack.c.l.b16 %v587
          %v747 = vunpack.c.h.b16 %v587
          %v748 = vunpack.c.l.b16 %v588
          %v749 = vunpack.c.h.b16 %v588
          %v750 = vunpack.c.l.b16 %v589
          %v751 = vunpack.c.h.b16 %v589
          %v752 = vunpack.c.l.b16 %v590
          %v753 = vunpack.c.h.b16 %v590
          %v754 = vunpack.c.l.b16 %v591
          %v755 = vunpack.c.h.b16 %v591
          %v756 = vunpack.c.l.b16 %v592
          %v757 = vunpack.c.h.b16 %v592
          %v758 = vunpack.c.l.b16 %v593
          %v759 = vunpack.c.h.b16 %v593
          %v760 = vunpack.c.l.b16 %v594
          %v761 = vunpack.c.h.b16 %v594
          %v762 = vunpack.c.l.b16 %v595
          %v763 = vunpack.c.h.b16 %v595
          %v764 = vunpack.c.l.b16 %v596
          %v765 = vunpack.c.h.b16 %v596
          %v766 = vunpack.c.l.b16 %v597
          %v767 = vunpack.c.h.b16 %v597
          %v768 = vunpack.c.l.b16 %v598
          %v769 = vunpack.c.h.b16 %v598
          %v770 = vunpack.c.l.b16 %v599
          %v771 = vunpack.c.h.b16 %v599
          %v772 = vunpack.c.l.b16 %v600
          %v773 = vunpack.c.h.b16 %v600
          %v774 = vunpack.c.l.b16 %v601
          %v775 = vunpack.c.h.b16 %v601
          %v776 = vunpack.c.l.b16 %v602
          %v777 = vunpack.c.h.b16 %v602
          %v778 = vunpack.c.l.b16 %v603
          %v779 = vunpack.c.h.b16 %v603
          %v780 = vunpack.c.l.b16 %v604
          %v781 = vunpack.c.h.b16 %v604
          %v782 = vunpack.c.l.b16 %v605
          %v783 = vunpack.c.h.b16 %v605
          %v784 = vunpack.c.l.b16 %v606
          %v785 = vunpack.c.h.b16 %v606
          %v786 = vunpack.c.l.b16 %v607
          %v787 = vunpack.c.h.b16 %v607
          %v788 = vunpack.c.l.b16 %v608
          %v789 = vunpack.c.h.b16 %v608
          %v790 = vunpack.c.l.b16 %v609
          %v791 = vunpack.c.h.b16 %v609
          %v792 = vunpack.c.l.b16 %v610
          %v793 = vunpack.c.h.b16 %v610
          %v794 = vunpack.c.l.b16 %v611
          %v795 = vunpack.c.h.b16 %v611
          %v796 = vunpack.c.l.b16 %v612
          %v797 = vunpack.c.h.b16 %v612
          %v798 = vunpack.c.l.b16 %v613
          %v799 = vunpack.c.h.b16 %v613
          %v800 = vunpack.c.l.b16 %v614
          %v801 = vunpack.c.h.b16 %v614
          %v802 = vunpack.c.l.b16 %v615
          %v803 = vunpack.c.h.b16 %v615
          %v804 = vunpack.c.l.b16 %v616
          %v805 = vunpack.c.h.b16 %v616
          %v806 = vunpack.c.l.b16 %v617
          %v807 = vunpack.c.h.b16 %v617
          %v808 = vunpack.c.l.b16 %v618
          %v809 = vunpack.c.h.b16 %v618
          %v810 = vunpack.c.l.b16 %v619
          %v811 = vunpack.c.h.b16 %v619
          %v812 = vpack.c.b16 %v686, %v684
          %v813 = vpack.c.b16 %v687, %v685
          %v814 = vpack.c.b16 %v690, %v688
          %v815 = vpack.c.b16 %v691, %v689
          %v816 = vpack.c.b16 %v694, %v692
          %v817 = vpack.c.b16 %v695, %v693
          %v818 = vpack.c.b16 %v698, %v696
          %v819 = vpack.c.b16 %v699, %v697
          %v820 = vpack.c.b16 %v702, %v700
          %v821 = vpack.c.b16 %v703, %v701
          %v822 = vpack.c.b16 %v706, %v704
          %v823 = vpack.c.b16 %v707, %v705
          %v824 = vpack.c.b16 %v710, %v708
          %v825 = vpack.c.b16 %v711, %v709
          %v826 = vpack.c.b16 %v714, %v712
          %v827 = vpack.c.b16 %v715, %v713
          %v828 = vpack.c.b16 %v718, %v716
          %v829 = vpack.c.b16 %v719, %v717
          %v830 = vpack.c.b16 %v722, %v720
          %v831 = vpack.c.b16 %v723, %v721
          %v832 = vpack.c.b16 %v726, %v724
          %v833 = vpack.c.b16 %v727, %v725
          %v834 = vpack.c.b16 %v730, %v728
          %v835 = vpack.c.b16 %v731, %v729
          %v836 = vpack.c.b16 %v734, %v732
          %v837 = vpack.c.b16 %v735, %v733
          %v838 = vpack.c.b16 %v738, %v736
          %v839 = vpack.c.b16 %v739, %v737
          %v840 = vpack.c.b16 %v742, %v740
          %v841 = vpack.c.b16 %v743, %v741
          %v842 = vpack.c.b16 %v746, %v744
          %v843 = vpack.c.b16 %v747, %v745
          %v844 = vpack.c.b16 %v750, %v748
          %v845 = vpack.c.b16 %v751, %v749
          %v846 = vpack.c.b16 %v754, %v752
          %v847 = vpack.c.b16 %v755, %v753
          %v848 = vpack.c.b16 %v758, %v756
          %v849 = vpack.c.b16 %v759, %v757
          %v850 = vpack.c.b16 %v762, %v760
          %v851 = vpack.c.b16 %v763, %v761
          %v852 = vpack.c.b16 %v766, %v764
          %v853 = vpack.c.b16 %v767, %v765
          %v854 = vpack.c.b16 %v770, %v768
          %v855 = vpack.c.b16 %v771, %v769
          %v856 = vpack.c.b16 %v774, %v772
          %v857 = vpack.c.b16 %v775, %v773
          %v858 = vpack.c.b16 %v778, %v776
          %v859 = vpack.c.b16 %v779, %v777
          %v860 = vpack.c.b16 %v782, %v780
          %v861 = vpack.c.b16 %v783, %v781
          %v862 = vpack.c.b16 %v786, %v784
          %v863 = vpack.c.b16 %v787, %v785
          %v864 = vpack.c.b16 %v790, %v788
          %v865 = vpack.c.b16 %v791, %v789
          %v866 = vpack.c.b16 %v794, %v792
          %v867 = vpack.c.b16 %v795, %v793
          %v868 = vpack.c.b16 %v798, %v796
          %v869 = vpack.c.b16 %v799, %v797
          %v870 = vpack.c.b16 %v802, %v800
          %v871 = vpack.c.b16 %v803, %v801
          %v872 = vpack.c.b16 %v806, %v804
          %v873 = vpack.c.b16 %v807, %v805
          %v874 = vpack.c.b16 %v810, %v808
          %v875 = vpack.c.b16 %v811, %v809
          %940 = vmatprep.subr.bf16.mxu0 %v813
          %941 = vmatpush1.bf16.msra.mxu0 %v812
          %942 = vmatprep.subr.bf16.mxu0 %v815
          %943 = vmatpush1.bf16.msra.mxu0 %v814
          %944 = vmatprep.subr.bf16.mxu0 %v817
          %945 = vmatpush1.bf16.msra.mxu0 %v816
          %946 = vmatprep.subr.bf16.mxu0 %v819
          %947 = vmatpush1.bf16.msra.mxu0 %v818
          %948 = vmatprep.subr.bf16.mxu0 %v821
          %949 = vmatpush1.bf16.msra.mxu0 %v820
          %950 = vmatprep.subr.bf16.mxu0 %v823
          %951 = vmatpush1.bf16.msra.mxu0 %v822
          %952 = vmatprep.subr.bf16.mxu0 %v825
          %953 = vmatpush1.bf16.msra.mxu0 %v824
          %954 = vmatprep.subr.bf16.mxu0 %v827
          %955 = vmatpush1.bf16.msra.mxu0 %v826
          %956 = vmatprep.subr.bf16.mxu0 %v829
          %957 = vmatpush1.bf16.msra.mxu0 %v828
          %958 = vmatprep.subr.bf16.mxu0 %v831
          %959 = vmatpush1.bf16.msra.mxu0 %v830
          %960 = vmatprep.subr.bf16.mxu0 %v833
          %961 = vmatpush1.bf16.msra.mxu0 %v832
          %962 = vmatprep.subr.bf16.mxu0 %v835
          %963 = vmatpush1.bf16.msra.mxu0 %v834
          %964 = vmatprep.subr.bf16.mxu0 %v837
          %965 = vmatpush1.bf16.msra.mxu0 %v836
          %966 = vmatprep.subr.bf16.mxu0 %v839
          %967 = vmatpush1.bf16.msra.mxu0 %v838
          %968 = vmatprep.subr.bf16.mxu0 %v841
          %969 = vmatpush1.bf16.msra.mxu0 %v840
          %970 = vmatprep.subr.bf16.mxu0 %v843
          %971 = vmatpush1.bf16.msra.mxu0 %v842
          %972 = vmatprep.mubr.bf16.mxu0 %v525
          %973 = vmatmul.mubr.bf16.gmra.mrb[0].mxu0 %v524
          %v974 = vpop.f32.mrb[0].mxu0
          %v975 = vadd.f32 0.0, %v974
          %v976 = vpop.f32.mrb[0].mxu0
          %v977 = vadd.f32 0.0, %v976
          %v978 = vpop.f32.mrb[0].mxu0
          %v979 = vadd.f32 0.0, %v978
          %v980 = vpop.f32.mrb[0].mxu0
          %v981 = vadd.f32 0.0, %v980
          %982 = vmatprep.mubr.bf16.mxu0 %v529
          %983 = vmatmul.mubr.bf16.gmra.mrb[0].mxu0 %v528
          %v984 = vpop.f32.mrb[0].mxu0
          %v985 = vadd.f32 0.0, %v984
          %v986 = vpop.f32.mrb[0].mxu0
          %v987 = vadd.f32 0.0, %v986
          %v988 = vpop.f32.mrb[0].mxu0
          %v989 = vadd.f32 0.0, %v988
          %v990 = vpop.f32.mrb[0].mxu0
          %v991 = vadd.f32 0.0, %v990
          %992 = vmatprep.mubr.bf16.mxu0 %v533
          %993 = vmatmul.mubr.bf16.gmra.mrb[0].mxu0 %v532
          %v994 = vpop.f32.mrb[0].mxu0
          %v995 = vadd.f32 0.0, %v994
          %v996 = vpop.f32.mrb[0].mxu0
          %v997 = vadd.f32 0.0, %v996
          %v998 = vpop.f32.mrb[0].mxu0
          %v999 = vadd.f32 0.0, %v998
          %v1000 = vpop.f32.mrb[0].mxu0
          %v1001 = vadd.f32 0.0, %v1000
          %1002 = vmatprep.mubr.bf16.mxu0 %v537
          %1003 = vmatmul.mubr.bf16.gmra.mrb[0].mxu0 %v536
          %v1004 = vpop.f32.mrb[0].mxu0
          %v1005 = vadd.f32 0.0, %v1004
          %v1006 = vpop.f32.mrb[0].mxu0
          %v1007 = vadd.f32 0.0, %v1006
          %v1008 = vpop.f32.mrb[0].mxu0
          %v1009 = vadd.f32 0.0, %v1008
          %v1010 = vpop.f32.mrb[0].mxu0
          %v1011 = vadd.f32 0.0, %v1010
          %1012 = vmatprep.mubr.bf16.mxu0 %v541
          %1013 = vmatmul.mubr.bf16.gmra.mrb[0].mxu0 %v540
          %v1014 = vpop.f32.mrb[0].mxu0
          %v1015 = vadd.f32 0.0, %v1014
          %v1016 = vpop.f32.mrb[0].mxu0
          %v1017 = vadd.f32 0.0, %v1016
          %v1018 = vpop.f32.mrb[0].mxu0
          %v1019 = vadd.f32 0.0, %v1018
          %v1020 = vpop.f32.mrb[0].mxu0
          %v1021 = vadd.f32 0.0, %v1020
          %1022 = vmatprep.mubr.bf16.mxu0 %v545
          %1023 = vmatmul.mubr.bf16.gmra.mrb[0].mxu0 %v544
          %v1024 = vpop.f32.mrb[0].mxu0
          %v1025 = vadd.f32 0.0, %v1024
          %v1026 = vpop.f32.mrb[0].mxu0
          %v1027 = vadd.f32 0.0, %v1026
          %v1028 = vpop.f32.mrb[0].mxu0
          %v1029 = vadd.f32 0.0, %v1028
          %v1030 = vpop.f32.mrb[0].mxu0
          %v1031 = vadd.f32 0.0, %v1030
          %1032 = vmatprep.mubr.bf16.mxu0 %v549
          %1033 = vmatmul.mubr.bf16.gmra.mrb[0].mxu0 %v548
          %v1034 = vpop.f32.mrb[0].mxu0
          %v1035 = vadd.f32 0.0, %v1034
          %v1036 = vpop.f32.mrb[0].mxu0
          %v1037 = vadd.f32 0.0, %v1036
          %v1038 = vpop.f32.mrb[0].mxu0
          %v1039 = vadd.f32 0.0, %v1038
          %v1040 = vpop.f32.mrb[0].mxu0
          %v1041 = vadd.f32 0.0, %v1040
          %1042 = vmatprep.mubr.bf16.mxu0 %v553
          %1043 = vmatmul.mubr.bf16.gmra.mrb[0].mxu0 %v552
          %v1044 = vpop.f32.mrb[0].mxu0
          %v1045 = vadd.f32 0.0, %v1044
          %v1046 = vpop.f32.mrb[0].mxu0
          %v1047 = vadd.f32 0.0, %v1046
          %v1048 = vpop.f32.mrb[0].mxu0
          %v1049 = vadd.f32 0.0, %v1048
          %v1050 = vpop.f32.mrb[0].mxu0
          %v1051 = vadd.f32 0.0, %v1050
          %1052 = vdwg.mxu0
          %1053 = vmatprep.subr.bf16.mxu0 %v845
          %1054 = vmatpush1.bf16.msra.mxu0 %v844
          %1055 = vmatprep.subr.bf16.mxu0 %v847
          %1056 = vmatpush1.bf16.msra.mxu0 %v846
          %1057 = vmatprep.subr.bf16.mxu0 %v849
          %1058 = vmatpush1.bf16.msra.mxu0 %v848
          %1059 = vmatprep.subr.bf16.mxu0 %v851
          %1060 = vmatpush1.bf16.msra.mxu0 %v850
          %1061 = vmatprep.subr.bf16.mxu0 %v853
          %1062 = vmatpush1.bf16.msra.mxu0 %v852
          %1063 = vmatprep.subr.bf16.mxu0 %v855
          %1064 = vmatpush1.bf16.msra.mxu0 %v854
          %1065 = vmatprep.subr.bf16.mxu0 %v857
          %1066 = vmatpush1.bf16.msra.mxu0 %v856
          %1067 = vmatprep.subr.bf16.mxu0 %v859
          %1068 = vmatpush1.bf16.msra.mxu0 %v858
          %1069 = vmatprep.subr.bf16.mxu0 %v861
          %1070 = vmatpush1.bf16.msra.mxu0 %v860
          %1071 = vmatprep.subr.bf16.mxu0 %v863
          %1072 = vmatpush1.bf16.msra.mxu0 %v862
          %1073 = vmatprep.subr.bf16.mxu0 %v865
          %1074 = vmatpush1.bf16.msra.mxu0 %v864
          %1075 = vmatprep.subr.bf16.mxu0 %v867
          %1076 = vmatpush1.bf16.msra.mxu0 %v866
          %1077 = vmatprep.subr.bf16.mxu0 %v869
          %1078 = vmatpush1.bf16.msra.mxu0 %v868
          %1079 = vmatprep.subr.bf16.mxu0 %v871
          %1080 = vmatpush1.bf16.msra.mxu0 %v870
          %1081 = vmatprep.subr.bf16.mxu0 %v873
          %1082 = vmatpush1.bf16.msra.mxu0 %v872
          %1083 = vmatprep.subr.bf16.mxu0 %v875
          %1084 = vmatpush1.bf16.msra.mxu0 %v874
          %1085 = vmatprep.mubr.bf16.mxu0 %v527
          %1086 = vmatmul.mubr.bf16.gmra.mrb[0].mxu0 %v526
          %v1087 = vpop.f32.mrb[0].mxu0
          %v1088 = vadd.f32 %v975, %v1087
          %v1089 = vpop.f32.mrb[0].mxu0
          %v1090 = vadd.f32 %v977, %v1089
          %v1091 = vpop.f32.mrb[0].mxu0
          %v1092 = vadd.f32 %v979, %v1091
          %v1093 = vpop.f32.mrb[0].mxu0
          %v1094 = vadd.f32 %v981, %v1093
          %1095 = vmatprep.mubr.bf16.mxu0 %v531
          %1096 = vmatmul.mubr.bf16.gmra.mrb[0].mxu0 %v530
          %v1097 = vpop.f32.mrb[0].mxu0
          %v1098 = vadd.f32 %v985, %v1097
          %v1099 = vpop.f32.mrb[0].mxu0
          %v1100 = vadd.f32 %v987, %v1099
          %v1101 = vpop.f32.mrb[0].mxu0
          %v1102 = vadd.f32 %v989, %v1101
          %v1103 = vpop.f32.mrb[0].mxu0
          %v1104 = vadd.f32 %v991, %v1103
          %1105 = vmatprep.mubr.bf16.mxu0 %v535
          %1106 = vmatmul.mubr.bf16.gmra.mrb[0].mxu0 %v534
          %v1107 = vpop.f32.mrb[0].mxu0
          %v1108 = vadd.f32 %v995, %v1107
          %v1109 = vpop.f32.mrb[0].mxu0
          %v1110 = vadd.f32 %v997, %v1109
          %v1111 = vpop.f32.mrb[0].mxu0
          %v1112 = vadd.f32 %v999, %v1111
          %v1113 = vpop.f32.mrb[0].mxu0
          %v1114 = vadd.f32 %v1001, %v1113
          %1115 = vmatprep.mubr.bf16.mxu0 %v539
          %1116 = vmatmul.mubr.bf16.gmra.mrb[0].mxu0 %v538
          %v1117 = vpop.f32.mrb[0].mxu0
          %v1118 = vadd.f32 %v1005, %v1117
          %v1119 = vpop.f32.mrb[0].mxu0
          %v1120 = vadd.f32 %v1007, %v1119
          %v1121 = vpop.f32.mrb[0].mxu0
          %v1122 = vadd.f32 %v1009, %v1121
          %v1123 = vpop.f32.mrb[0].mxu0
          %v1124 = vadd.f32 %v1011, %v1123
          %1125 = vmatprep.mubr.bf16.mxu0 %v543
          %1126 = vmatmul.mubr.bf16.gmra.mrb[0].mxu0 %v542
          %v1127 = vpop.f32.mrb[0].mxu0
          %v1128 = vadd.f32 %v1015, %v1127
          %v1129 = vpop.f32.mrb[0].mxu0
          %v1130 = vadd.f32 %v1017, %v1129
          %v1131 = vpop.f32.mrb[0].mxu0
          %v1132 = vadd.f32 %v1019, %v1131
          %v1133 = vpop.f32.mrb[0].mxu0
          %v1134 = vadd.f32 %v1021, %v1133
          %1135 = vmatprep.mubr.bf16.mxu0 %v547
          %1136 = vmatmul.mubr.bf16.gmra.mrb[0].mxu0 %v546
          %v1137 = vpop.f32.mrb[0].mxu0
          %v1138 = vadd.f32 %v1025, %v1137
          %v1139 = vpop.f32.mrb[0].mxu0
          %v1140 = vadd.f32 %v1027, %v1139
          %v1141 = vpop.f32.mrb[0].mxu0
          %v1142 = vadd.f32 %v1029, %v1141
          %v1143 = vpop.f32.mrb[0].mxu0
          %v1144 = vadd.f32 %v1031, %v1143
          %1145 = vmatprep.mubr.bf16.mxu0 %v551
          %1146 = vmatmul.mubr.bf16.gmra.mrb[0].mxu0 %v550
          %v1147 = vpop.f32.mrb[0].mxu0
          %v1148 = vadd.f32 %v1035, %v1147
          %v1149 = vpop.f32.mrb[0].mxu0
          %v1150 = vadd.f32 %v1037, %v1149
          %v1151 = vpop.f32.mrb[0].mxu0
          %v1152 = vadd.f32 %v1039, %v1151
          %v1153 = vpop.f32.mrb[0].mxu0
          %v1154 = vadd.f32 %v1041, %v1153
          %1155 = vmatprep.mubr.bf16.mxu0 %v555
          %1156 = vmatmul.mubr.bf16.gmra.mrb[0].mxu0 %v554
          %v1157 = vpop.f32.mrb[0].mxu0
          %v1158 = vadd.f32 %v1045, %v1157
          %v1159 = vpop.f32.mrb[0].mxu0
          %v1160 = vadd.f32 %v1047, %v1159
          %v1161 = vpop.f32.mrb[0].mxu0
          %v1162 = vadd.f32 %v1049, %v1161
          %v1163 = vpop.f32.mrb[0].mxu0
          %v1164 = vadd.f32 %v1051, %v1163
          %1165 = vdwg.mxu0
          %v1166 = vadd.f32 %v428, %v1088
          %v1167 = vadd.f32 %v429, %v1090
          %v1168 = vadd.f32 %v430, %v1092
          %v1169 = vadd.f32 %v431, %v1094
          %v1170 = vadd.f32 %v432, %v1098
          %v1171 = vadd.f32 %v433, %v1100
          %v1172 = vadd.f32 %v434, %v1102
          %v1173 = vadd.f32 %v435, %v1104
          %v1174 = vadd.f32 %v436, %v1108
          %v1175 = vadd.f32 %v437, %v1110
          %v1176 = vadd.f32 %v438, %v1112
          %v1177 = vadd.f32 %v439, %v1114
          %v1178 = vadd.f32 %v440, %v1118
          %v1179 = vadd.f32 %v441, %v1120
          %v1180 = vadd.f32 %v442, %v1122
          %v1181 = vadd.f32 %v443, %v1124
          %v1182 = vadd.f32 %v444, %v1128
          %v1183 = vadd.f32 %v445, %v1130
          %v1184 = vadd.f32 %v446, %v1132
          %v1185 = vadd.f32 %v447, %v1134
          %v1186 = vadd.f32 %v448, %v1138
          %v1187 = vadd.f32 %v449, %v1140
          %v1188 = vadd.f32 %v450, %v1142
          %v1189 = vadd.f32 %v451, %v1144
          %v1190 = vadd.f32 %v452, %v1148
          %v1191 = vadd.f32 %v453, %v1150
          %v1192 = vadd.f32 %v454, %v1152
          %v1193 = vadd.f32 %v455, %v1154
          %v1194 = vadd.f32 %v456, %v1158
          %v1195 = vadd.f32 %v457, %v1160
          %v1196 = vadd.f32 %v458, %v1162
          %v1197 = vadd.f32 %v459, %v1164
          %1198 = vst [vmem:[%s357] sm:$0xff] %v1166
          %1199 = vst [vmem:[%s357 + $0x8] sm:$0xff] %v1167
          %1200 = vst [vmem:[%s357 + $0x10] sm:$0xff] %v1168
          %1201 = vst [vmem:[%s357 + $0x18] sm:$0xff] %v1169
          %1202 = vst [vmem:[%s357 + $0x20] sm:$0xff] %v1170
          %1203 = vst [vmem:[%s357 + $0x28] sm:$0xff] %v1171
          %1204 = vst [vmem:[%s357 + $0x30] sm:$0xff] %v1172
          %1205 = vst [vmem:[%s357 + $0x38] sm:$0xff] %v1173
          %1206 = vst [vmem:[%s357 + $0x40] sm:$0xff] %v1174
          %1207 = vst [vmem:[%s357 + $0x48] sm:$0xff] %v1175
          %1208 = vst [vmem:[%s357 + $0x50] sm:$0xff] %v1176
          %1209 = vst [vmem:[%s357 + $0x58] sm:$0xff] %v1177
          %1210 = vst [vmem:[%s357 + $0x60] sm:$0xff] %v1178
          %1211 = vst [vmem:[%s357 + $0x68] sm:$0xff] %v1179
          %1212 = vst [vmem:[%s357 + $0x70] sm:$0xff] %v1180
          %1213 = vst [vmem:[%s357 + $0x78] sm:$0xff] %v1181
          %1214 = vst [vmem:[%s357 + $0x80] sm:$0xff] %v1182
          %1215 = vst [vmem:[%s357 + $0x88] sm:$0xff] %v1183
          %1216 = vst [vmem:[%s357 + $0x90] sm:$0xff] %v1184
          %1217 = vst [vmem:[%s357 + $0x98] sm:$0xff] %v1185
          %1218 = vst [vmem:[%s357 + $0xa0] sm:$0xff] %v1186
          %1219 = vst [vmem:[%s357 + $0xa8] sm:$0xff] %v1187
          %1220 = vst [vmem:[%s357 + $0xb0] sm:$0xff] %v1188
          %1221 = vst [vmem:[%s357 + $0xb8] sm:$0xff] %v1189
          %1222 = vst [vmem:[%s357 + $0xc0] sm:$0xff] %v1190
          %1223 = vst [vmem:[%s357 + $0xc8] sm:$0xff] %v1191
          %1224 = vst [vmem:[%s357 + $0xd0] sm:$0xff] %v1192
          %1225 = vst [vmem:[%s357 + $0xd8] sm:$0xff] %v1193
          %1226 = vst [vmem:[%s357 + $0xe0] sm:$0xff] %v1194
          %1227 = vst [vmem:[%s357 + $0xe8] sm:$0xff] %v1195
          %1228 = vst [vmem:[%s357 + $0xf0] sm:$0xff] %v1196
          %1229 = vst [vmem:[%s357 + $0xf8] sm:$0xff] %v1197
        $region56: #{tpu_custom_call.1} parent=35 // pred_fallthru
          _
        %p1230 = scmp.ge.s32.totalorder %s31, 1
        // Predicated region
        $region57: #{tpu_custom_call.1} parent=35 // pred_check
          %p1231 = pneg %p1230
        $region58: #{tpu_custom_call.1} parent=35 // pred_check_branch
          %1233 = sbr.rel (%p1231) target = $region60
        $region59: #{tpu_custom_call.1} parent=35 // pred_region
          %v1234 = vld [vmem:[%s357] sm:$0xff]
          %v1235 = vld [vmem:[%s357 + $0x8] sm:$0xff]
          %v1236 = vld [vmem:[%s357 + $0x10] sm:$0xff]
          %v1237 = vld [vmem:[%s357 + $0x18] sm:$0xff]
          %v1238 = vld [vmem:[%s357 + $0x20] sm:$0xff]
          %v1239 = vld [vmem:[%s357 + $0x28] sm:$0xff]
          %v1240 = vld [vmem:[%s357 + $0x30] sm:$0xff]
          %v1241 = vld [vmem:[%s357 + $0x38] sm:$0xff]
          %v1242 = vld [vmem:[%s357 + $0x40] sm:$0xff]
          %v1243 = vld [vmem:[%s357 + $0x48] sm:$0xff]
          %v1244 = vld [vmem:[%s357 + $0x50] sm:$0xff]
          %v1245 = vld [vmem:[%s357 + $0x58] sm:$0xff]
          %v1246 = vld [vmem:[%s357 + $0x60] sm:$0xff]
          %v1247 = vld [vmem:[%s357 + $0x68] sm:$0xff]
          %v1248 = vld [vmem:[%s357 + $0x70] sm:$0xff]
          %v1249 = vld [vmem:[%s357 + $0x78] sm:$0xff]
          %v1250 = vld [vmem:[%s357 + $0x80] sm:$0xff]
          %v1251 = vld [vmem:[%s357 + $0x88] sm:$0xff]
          %v1252 = vld [vmem:[%s357 + $0x90] sm:$0xff]
          %v1253 = vld [vmem:[%s357 + $0x98] sm:$0xff]
          %v1254 = vld [vmem:[%s357 + $0xa0] sm:$0xff]
          %v1255 = vld [vmem:[%s357 + $0xa8] sm:$0xff]
          %v1256 = vld [vmem:[%s357 + $0xb0] sm:$0xff]
          %v1257 = vld [vmem:[%s357 + $0xb8] sm:$0xff]
          %v1258 = vld [vmem:[%s357 + $0xc0] sm:$0xff]
          %v1259 = vld [vmem:[%s357 + $0xc8] sm:$0xff]
          %v1260 = vld [vmem:[%s357 + $0xd0] sm:$0xff]
          %v1261 = vld [vmem:[%s357 + $0xd8] sm:$0xff]
          %v1262 = vld [vmem:[%s357 + $0xe0] sm:$0xff]
          %v1263 = vld [vmem:[%s357 + $0xe8] sm:$0xff]
          %v1264 = vld [vmem:[%s357 + $0xf0] sm:$0xff]
          %v1265 = vld [vmem:[%s357 + $0xf8] sm:$0xff]
          %v1266 = vld [vmem:[%s310] sm:$0xff]
          %v1267 = vld [vmem:[%s310 + $0x8] sm:$0xff]
          %v1268 = vld [vmem:[%s310 + $0x10] sm:$0xff]
          %v1269 = vld [vmem:[%s310 + $0x18] sm:$0xff]
          %v1270 = vld [vmem:[%s310 + $0x20] sm:$0xff]
          %v1271 = vld [vmem:[%s310 + $0x28] sm:$0xff]
          %v1272 = vld [vmem:[%s310 + $0x30] sm:$0xff]
          %v1273 = vld [vmem:[%s310 + $0x38] sm:$0xff]
          %v1274 = vld [vmem:[%s310 + $0x40] sm:$0xff]
          %v1275 = vld [vmem:[%s310 + $0x48] sm:$0xff]
          %v1276 = vld [vmem:[%s310 + $0x50] sm:$0xff]
          %v1277 = vld [vmem:[%s310 + $0x58] sm:$0xff]
          %v1278 = vld [vmem:[%s310 + $0x60] sm:$0xff]
          %v1279 = vld [vmem:[%s310 + $0x68] sm:$0xff]
          %v1280 = vld [vmem:[%s310 + $0x70] sm:$0xff]
          %v1281 = vld [vmem:[%s310 + $0x78] sm:$0xff]
          %v1282 = vld [vmem:[%s310 + $0x80] sm:$0xff]
          %v1283 = vld [vmem:[%s310 + $0x88] sm:$0xff]
          %v1284 = vld [vmem:[%s310 + $0x90] sm:$0xff]
          %v1285 = vld [vmem:[%s310 + $0x98] sm:$0xff]
          %v1286 = vld [vmem:[%s310 + $0xa0] sm:$0xff]
          %v1287 = vld [vmem:[%s310 + $0xa8] sm:$0xff]
          %v1288 = vld [vmem:[%s310 + $0xb0] sm:$0xff]
          %v1289 = vld [vmem:[%s310 + $0xb8] sm:$0xff]
          %v1290 = vld [vmem:[%s310 + $0xc0] sm:$0xff]
          %v1291 = vld [vmem:[%s310 + $0xc8] sm:$0xff]
          %v1292 = vld [vmem:[%s310 + $0xd0] sm:$0xff]
          %v1293 = vld [vmem:[%s310 + $0xd8] sm:$0xff]
          %v1294 = vld [vmem:[%s310 + $0xe0] sm:$0xff]
          %v1295 = vld [vmem:[%s310 + $0xe8] sm:$0xff]
          %v1296 = vld [vmem:[%s310 + $0xf0] sm:$0xff]
          %v1297 = vld [vmem:[%s310 + $0xf8] sm:$0xff]
          %v1298 = vld [vmem:[%s310 + $0x100] sm:$0xff]
          %v1299 = vld [vmem:[%s310 + $0x108] sm:$0xff]
          %v1300 = vld [vmem:[%s310 + $0x110] sm:$0xff]
          %v1301 = vld [vmem:[%s310 + $0x118] sm:$0xff]
          %v1302 = vld [vmem:[%s310 + $0x120] sm:$0xff]
          %v1303 = vld [vmem:[%s310 + $0x128] sm:$0xff]
          %v1304 = vld [vmem:[%s310 + $0x130] sm:$0xff]
          %v1305 = vld [vmem:[%s310 + $0x138] sm:$0xff]
          %v1306 = vld [vmem:[%s310 + $0x140] sm:$0xff]
          %v1307 = vld [vmem:[%s310 + $0x148] sm:$0xff]
          %v1308 = vld [vmem:[%s310 + $0x150] sm:$0xff]
          %v1309 = vld [vmem:[%s310 + $0x158] sm:$0xff]
          %v1310 = vld [vmem:[%s310 + $0x160] sm:$0xff]
          %v1311 = vld [vmem:[%s310 + $0x168] sm:$0xff]
          %v1312 = vld [vmem:[%s310 + $0x170] sm:$0xff]
          %v1313 = vld [vmem:[%s310 + $0x178] sm:$0xff]
          %v1314 = vld [vmem:[%s310 + $0x180] sm:$0xff]
          %v1315 = vld [vmem:[%s310 + $0x188] sm:$0xff]
          %v1316 = vld [vmem:[%s310 + $0x190] sm:$0xff]
          %v1317 = vld [vmem:[%s310 + $0x198] sm:$0xff]
          %v1318 = vld [vmem:[%s310 + $0x1a0] sm:$0xff]
          %v1319 = vld [vmem:[%s310 + $0x1a8] sm:$0xff]
          %v1320 = vld [vmem:[%s310 + $0x1b0] sm:$0xff]
          %v1321 = vld [vmem:[%s310 + $0x1b8] sm:$0xff]
          %v1322 = vld [vmem:[%s310 + $0x1c0] sm:$0xff]
          %v1323 = vld [vmem:[%s310 + $0x1c8] sm:$0xff]
          %v1324 = vld [vmem:[%s310 + $0x1d0] sm:$0xff]
          %v1325 = vld [vmem:[%s310 + $0x1d8] sm:$0xff]
          %v1326 = vld [vmem:[%s310 + $0x1e0] sm:$0xff]
          %v1327 = vld [vmem:[%s310 + $0x1e8] sm:$0xff]
          %v1328 = vld [vmem:[%s310 + $0x1f0] sm:$0xff]
          %v1329 = vld [vmem:[%s310 + $0x1f8] sm:$0xff]
          %v1330 = vpack.c.bf16 %v1270, %v1266
          %v1331 = vpack.c.bf16 %v1271, %v1267
          %v1332 = vpack.c.bf16 %v1272, %v1268
          %v1333 = vpack.c.bf16 %v1273, %v1269
          %v1334 = vpack.c.bf16 %v1278, %v1274
          %v1335 = vpack.c.bf16 %v1279, %v1275
          %v1336 = vpack.c.bf16 %v1280, %v1276
          %v1337 = vpack.c.bf16 %v1281, %v1277
          %v1338 = vpack.c.bf16 %v1286, %v1282
          %v1339 = vpack.c.bf16 %v1287, %v1283
          %v1340 = vpack.c.bf16 %v1288, %v1284
          %v1341 = vpack.c.bf16 %v1289, %v1285
          %v1342 = vpack.c.bf16 %v1294, %v1290
          %v1343 = vpack.c.bf16 %v1295, %v1291
          %v1344 = vpack.c.bf16 %v1296, %v1292
          %v1345 = vpack.c.bf16 %v1297, %v1293
          %v1346 = vpack.c.bf16 %v1302, %v1298
          %v1347 = vpack.c.bf16 %v1303, %v1299
          %v1348 = vpack.c.bf16 %v1304, %v1300
          %v1349 = vpack.c.bf16 %v1305, %v1301
          %v1350 = vpack.c.bf16 %v1310, %v1306
          %v1351 = vpack.c.bf16 %v1311, %v1307
          %v1352 = vpack.c.bf16 %v1312, %v1308
          %v1353 = vpack.c.bf16 %v1313, %v1309
          %v1354 = vpack.c.bf16 %v1318, %v1314
          %v1355 = vpack.c.bf16 %v1319, %v1315
          %v1356 = vpack.c.bf16 %v1320, %v1316
          %v1357 = vpack.c.bf16 %v1321, %v1317
          %v1358 = vpack.c.bf16 %v1326, %v1322
          %v1359 = vpack.c.bf16 %v1327, %v1323
          %v1360 = vpack.c.bf16 %v1328, %v1324
          %v1361 = vpack.c.bf16 %v1329, %v1325
          %v1362 = vld [vmem:[%s319] sm:$0xff]
          %v1363 = vld [vmem:[%s319 + $0x8] sm:$0xff]
          %v1364 = vld [vmem:[%s319 + $0x10] sm:$0xff]
          %v1365 = vld [vmem:[%s319 + $0x18] sm:$0xff]
          %v1366 = vld [vmem:[%s319 + $0x20] sm:$0xff]
          %v1367 = vld [vmem:[%s319 + $0x28] sm:$0xff]
          %v1368 = vld [vmem:[%s319 + $0x30] sm:$0xff]
          %v1369 = vld [vmem:[%s319 + $0x38] sm:$0xff]
          %v1370 = vld [vmem:[%s319 + $0x40] sm:$0xff]
          %v1371 = vld [vmem:[%s319 + $0x48] sm:$0xff]
          %v1372 = vld [vmem:[%s319 + $0x50] sm:$0xff]
          %v1373 = vld [vmem:[%s319 + $0x58] sm:$0xff]
          %v1374 = vld [vmem:[%s319 + $0x60] sm:$0xff]
          %v1375 = vld [vmem:[%s319 + $0x68] sm:$0xff]
          %v1376 = vld [vmem:[%s319 + $0x70] sm:$0xff]
          %v1377 = vld [vmem:[%s319 + $0x78] sm:$0xff]
          %v1378 = vld [vmem:[%s319 + $0x80] sm:$0xff]
          %v1379 = vld [vmem:[%s319 + $0x88] sm:$0xff]
          %v1380 = vld [vmem:[%s319 + $0x90] sm:$0xff]
          %v1381 = vld [vmem:[%s319 + $0x98] sm:$0xff]
          %v1382 = vld [vmem:[%s319 + $0xa0] sm:$0xff]
          %v1383 = vld [vmem:[%s319 + $0xa8] sm:$0xff]
          %v1384 = vld [vmem:[%s319 + $0xb0] sm:$0xff]
          %v1385 = vld [vmem:[%s319 + $0xb8] sm:$0xff]
          %v1386 = vld [vmem:[%s319 + $0xc0] sm:$0xff]
          %v1387 = vld [vmem:[%s319 + $0xc8] sm:$0xff]
          %v1388 = vld [vmem:[%s319 + $0xd0] sm:$0xff]
          %v1389 = vld [vmem:[%s319 + $0xd8] sm:$0xff]
          %v1390 = vld [vmem:[%s319 + $0xe0] sm:$0xff]
          %v1391 = vld [vmem:[%s319 + $0xe8] sm:$0xff]
          %v1392 = vld [vmem:[%s319 + $0xf0] sm:$0xff]
          %v1393 = vld [vmem:[%s319 + $0xf8] sm:$0xff]
          %v1394 = vld [vmem:[%s319 + $0x100] sm:$0xff]
          %v1395 = vld [vmem:[%s319 + $0x108] sm:$0xff]
          %v1396 = vld [vmem:[%s319 + $0x110] sm:$0xff]
          %v1397 = vld [vmem:[%s319 + $0x118] sm:$0xff]
          %v1398 = vld [vmem:[%s319 + $0x120] sm:$0xff]
          %v1399 = vld [vmem:[%s319 + $0x128] sm:$0xff]
          %v1400 = vld [vmem:[%s319 + $0x130] sm:$0xff]
          %v1401 = vld [vmem:[%s319 + $0x138] sm:$0xff]
          %v1402 = vld [vmem:[%s319 + $0x140] sm:$0xff]
          %v1403 = vld [vmem:[%s319 + $0x148] sm:$0xff]
          %v1404 = vld [vmem:[%s319 + $0x150] sm:$0xff]
          %v1405 = vld [vmem:[%s319 + $0x158] sm:$0xff]
          %v1406 = vld [vmem:[%s319 + $0x160] sm:$0xff]
          %v1407 = vld [vmem:[%s319 + $0x168] sm:$0xff]
          %v1408 = vld [vmem:[%s319 + $0x170] sm:$0xff]
          %v1409 = vld [vmem:[%s319 + $0x178] sm:$0xff]
          %v1410 = vld [vmem:[%s319 + $0x180] sm:$0xff]
          %v1411 = vld [vmem:[%s319 + $0x188] sm:$0xff]
          %v1412 = vld [vmem:[%s319 + $0x190] sm:$0xff]
          %v1413 = vld [vmem:[%s319 + $0x198] sm:$0xff]
          %v1414 = vld [vmem:[%s319 + $0x1a0] sm:$0xff]
          %v1415 = vld [vmem:[%s319 + $0x1a8] sm:$0xff]
          %v1416 = vld [vmem:[%s319 + $0x1b0] sm:$0xff]
          %v1417 = vld [vmem:[%s319 + $0x1b8] sm:$0xff]
          %v1418 = vld [vmem:[%s319 + $0x1c0] sm:$0xff]
          %v1419 = vld [vmem:[%s319 + $0x1c8] sm:$0xff]
          %v1420 = vld [vmem:[%s319 + $0x1d0] sm:$0xff]
          %v1421 = vld [vmem:[%s319 + $0x1d8] sm:$0xff]
          %v1422 = vld [vmem:[%s319 + $0x1e0] sm:$0xff]
          %v1423 = vld [vmem:[%s319 + $0x1e8] sm:$0xff]
          %v1424 = vld [vmem:[%s319 + $0x1f0] sm:$0xff]
          %v1425 = vld [vmem:[%s319 + $0x1f8] sm:$0xff]
          %v1490 = vunpack.c.l.b16 %v1362
          %v1491 = vunpack.c.h.b16 %v1362
          %v1492 = vunpack.c.l.b16 %v1363
          %v1493 = vunpack.c.h.b16 %v1363
          %v1494 = vunpack.c.l.b16 %v1364
          %v1495 = vunpack.c.h.b16 %v1364
          %v1496 = vunpack.c.l.b16 %v1365
          %v1497 = vunpack.c.h.b16 %v1365
          %v1498 = vunpack.c.l.b16 %v1366
          %v1499 = vunpack.c.h.b16 %v1366
          %v1500 = vunpack.c.l.b16 %v1367
          %v1501 = vunpack.c.h.b16 %v1367
          %v1502 = vunpack.c.l.b16 %v1368
          %v1503 = vunpack.c.h.b16 %v1368
          %v1504 = vunpack.c.l.b16 %v1369
          %v1505 = vunpack.c.h.b16 %v1369
          %v1506 = vunpack.c.l.b16 %v1370
          %v1507 = vunpack.c.h.b16 %v1370
          %v1508 = vunpack.c.l.b16 %v1371
          %v1509 = vunpack.c.h.b16 %v1371
          %v1510 = vunpack.c.l.b16 %v1372
          %v1511 = vunpack.c.h.b16 %v1372
          %v1512 = vunpack.c.l.b16 %v1373
          %v1513 = vunpack.c.h.b16 %v1373
          %v1514 = vunpack.c.l.b16 %v1374
          %v1515 = vunpack.c.h.b16 %v1374
          %v1516 = vunpack.c.l.b16 %v1375
          %v1517 = vunpack.c.h.b16 %v1375
          %v1518 = vunpack.c.l.b16 %v1376
          %v1519 = vunpack.c.h.b16 %v1376
          %v1520 = vunpack.c.l.b16 %v1377
          %v1521 = vunpack.c.h.b16 %v1377
          %v1522 = vunpack.c.l.b16 %v1378
          %v1523 = vunpack.c.h.b16 %v1378
          %v1524 = vunpack.c.l.b16 %v1379
          %v1525 = vunpack.c.h.b16 %v1379
          %v1526 = vunpack.c.l.b16 %v1380
          %v1527 = vunpack.c.h.b16 %v1380
          %v1528 = vunpack.c.l.b16 %v1381
          %v1529 = vunpack.c.h.b16 %v1381
          %v1530 = vunpack.c.l.b16 %v1382
          %v1531 = vunpack.c.h.b16 %v1382
          %v1532 = vunpack.c.l.b16 %v1383
          %v1533 = vunpack.c.h.b16 %v1383
          %v1534 = vunpack.c.l.b16 %v1384
          %v1535 = vunpack.c.h.b16 %v1384
          %v1536 = vunpack.c.l.b16 %v1385
          %v1537 = vunpack.c.h.b16 %v1385
          %v1538 = vunpack.c.l.b16 %v1386
          %v1539 = vunpack.c.h.b16 %v1386
          %v1540 = vunpack.c.l.b16 %v1387
          %v1541 = vunpack.c.h.b16 %v1387
          %v1542 = vunpack.c.l.b16 %v1388
          %v1543 = vunpack.c.h.b16 %v1388
          %v1544 = vunpack.c.l.b16 %v1389
          %v1545 = vunpack.c.h.b16 %v1389
          %v1546 = vunpack.c.l.b16 %v1390
          %v1547 = vunpack.c.h.b16 %v1390
          %v1548 = vunpack.c.l.b16 %v1391
          %v1549 = vunpack.c.h.b16 %v1391
          %v1550 = vunpack.c.l.b16 %v1392
          %v1551 = vunpack.c.h.b16 %v1392
          %v1552 = vunpack.c.l.b16 %v1393
          %v1553 = vunpack.c.h.b16 %v1393
          %v1554 = vunpack.c.l.b16 %v1394
          %v1555 = vunpack.c.h.b16 %v1394
          %v1556 = vunpack.c.l.b16 %v1395
          %v1557 = vunpack.c.h.b16 %v1395
          %v1558 = vunpack.c.l.b16 %v1396
          %v1559 = vunpack.c.h.b16 %v1396
          %v1560 = vunpack.c.l.b16 %v1397
          %v1561 = vunpack.c.h.b16 %v1397
          %v1562 = vunpack.c.l.b16 %v1398
          %v1563 = vunpack.c.h.b16 %v1398
          %v1564 = vunpack.c.l.b16 %v1399
          %v1565 = vunpack.c.h.b16 %v1399
          %v1566 = vunpack.c.l.b16 %v1400
          %v1567 = vunpack.c.h.b16 %v1400
          %v1568 = vunpack.c.l.b16 %v1401
          %v1569 = vunpack.c.h.b16 %v1401
          %v1570 = vunpack.c.l.b16 %v1402
          %v1571 = vunpack.c.h.b16 %v1402
          %v1572 = vunpack.c.l.b16 %v1403
          %v1573 = vunpack.c.h.b16 %v1403
          %v1574 = vunpack.c.l.b16 %v1404
          %v1575 = vunpack.c.h.b16 %v1404
          %v1576 = vunpack.c.l.b16 %v1405
          %v1577 = vunpack.c.h.b16 %v1405
          %v1578 = vunpack.c.l.b16 %v1406
          %v1579 = vunpack.c.h.b16 %v1406
          %v1580 = vunpack.c.l.b16 %v1407
          %v1581 = vunpack.c.h.b16 %v1407
          %v1582 = vunpack.c.l.b16 %v1408
          %v1583 = vunpack.c.h.b16 %v1408
          %v1584 = vunpack.c.l.b16 %v1409
          %v1585 = vunpack.c.h.b16 %v1409
          %v1586 = vunpack.c.l.b16 %v1410
          %v1587 = vunpack.c.h.b16 %v1410
          %v1588 = vunpack.c.l.b16 %v1411
          %v1589 = vunpack.c.h.b16 %v1411
          %v1590 = vunpack.c.l.b16 %v1412
          %v1591 = vunpack.c.h.b16 %v1412
          %v1592 = vunpack.c.l.b16 %v1413
          %v1593 = vunpack.c.h.b16 %v1413
          %v1594 = vunpack.c.l.b16 %v1414
          %v1595 = vunpack.c.h.b16 %v1414
          %v1596 = vunpack.c.l.b16 %v1415
          %v1597 = vunpack.c.h.b16 %v1415
          %v1598 = vunpack.c.l.b16 %v1416
          %v1599 = vunpack.c.h.b16 %v1416
          %v1600 = vunpack.c.l.b16 %v1417
          %v1601 = vunpack.c.h.b16 %v1417
          %v1602 = vunpack.c.l.b16 %v1418
          %v1603 = vunpack.c.h.b16 %v1418
          %v1604 = vunpack.c.l.b16 %v1419
          %v1605 = vunpack.c.h.b16 %v1419
          %v1606 = vunpack.c.l.b16 %v1420
          %v1607 = vunpack.c.h.b16 %v1420
          %v1608 = vunpack.c.l.b16 %v1421
          %v1609 = vunpack.c.h.b16 %v1421
          %v1610 = vunpack.c.l.b16 %v1422
          %v1611 = vunpack.c.h.b16 %v1422
          %v1612 = vunpack.c.l.b16 %v1423
          %v1613 = vunpack.c.h.b16 %v1423
          %v1614 = vunpack.c.l.b16 %v1424
          %v1615 = vunpack.c.h.b16 %v1424
          %v1616 = vunpack.c.l.b16 %v1425
          %v1617 = vunpack.c.h.b16 %v1425
          %v1618 = vpack.c.b16 %v1492, %v1490
          %v1619 = vpack.c.b16 %v1493, %v1491
          %v1620 = vpack.c.b16 %v1496, %v1494
          %v1621 = vpack.c.b16 %v1497, %v1495
          %v1622 = vpack.c.b16 %v1500, %v1498
          %v1623 = vpack.c.b16 %v1501, %v1499
          %v1624 = vpack.c.b16 %v1504, %v1502
          %v1625 = vpack.c.b16 %v1505, %v1503
          %v1626 = vpack.c.b16 %v1508, %v1506
          %v1627 = vpack.c.b16 %v1509, %v1507
          %v1628 = vpack.c.b16 %v1512, %v1510
          %v1629 = vpack.c.b16 %v1513, %v1511
          %v1630 = vpack.c.b16 %v1516, %v1514
          %v1631 = vpack.c.b16 %v1517, %v1515
          %v1632 = vpack.c.b16 %v1520, %v1518
          %v1633 = vpack.c.b16 %v1521, %v1519
          %v1634 = vpack.c.b16 %v1524, %v1522
          %v1635 = vpack.c.b16 %v1525, %v1523
          %v1636 = vpack.c.b16 %v1528, %v1526
          %v1637 = vpack.c.b16 %v1529, %v1527
          %v1638 = vpack.c.b16 %v1532, %v1530
          %v1639 = vpack.c.b16 %v1533, %v1531
          %v1640 = vpack.c.b16 %v1536, %v1534
          %v1641 = vpack.c.b16 %v1537, %v1535
          %v1642 = vpack.c.b16 %v1540, %v1538
          %v1643 = vpack.c.b16 %v1541, %v1539
          %v1644 = vpack.c.b16 %v1544, %v1542
          %v1645 = vpack.c.b16 %v1545, %v1543
          %v1646 = vpack.c.b16 %v1548, %v1546
          %v1647 = vpack.c.b16 %v1549, %v1547
          %v1648 = vpack.c.b16 %v1552, %v1550
          %v1649 = vpack.c.b16 %v1553, %v1551
          %v1650 = vpack.c.b16 %v1556, %v1554
          %v1651 = vpack.c.b16 %v1557, %v1555
          %v1652 = vpack.c.b16 %v1560, %v1558
          %v1653 = vpack.c.b16 %v1561, %v1559
          %v1654 = vpack.c.b16 %v1564, %v1562
          %v1655 = vpack.c.b16 %v1565, %v1563
          %v1656 = vpack.c.b16 %v1568, %v1566
          %v1657 = vpack.c.b16 %v1569, %v1567
          %v1658 = vpack.c.b16 %v1572, %v1570
          %v1659 = vpack.c.b16 %v1573, %v1571
          %v1660 = vpack.c.b16 %v1576, %v1574
          %v1661 = vpack.c.b16 %v1577, %v1575
          %v1662 = vpack.c.b16 %v1580, %v1578
          %v1663 = vpack.c.b16 %v1581, %v1579
          %v1664 = vpack.c.b16 %v1584, %v1582
          %v1665 = vpack.c.b16 %v1585, %v1583
          %v1666 = vpack.c.b16 %v1588, %v1586
          %v1667 = vpack.c.b16 %v1589, %v1587
          %v1668 = vpack.c.b16 %v1592, %v1590
          %v1669 = vpack.c.b16 %v1593, %v1591
          %v1670 = vpack.c.b16 %v1596, %v1594
          %v1671 = vpack.c.b16 %v1597, %v1595
          %v1672 = vpack.c.b16 %v1600, %v1598
          %v1673 = vpack.c.b16 %v1601, %v1599
          %v1674 = vpack.c.b16 %v1604, %v1602
          %v1675 = vpack.c.b16 %v1605, %v1603
          %v1676 = vpack.c.b16 %v1608, %v1606
          %v1677 = vpack.c.b16 %v1609, %v1607
          %v1678 = vpack.c.b16 %v1612, %v1610
          %v1679 = vpack.c.b16 %v1613, %v1611
          %v1680 = vpack.c.b16 %v1616, %v1614
          %v1681 = vpack.c.b16 %v1617, %v1615
          %1746 = vmatprep.subr.bf16.mxu0 %v1619
          %1747 = vmatpush1.bf16.msra.mxu0 %v1618
          %1748 = vmatprep.subr.bf16.mxu0 %v1621
          %1749 = vmatpush1.bf16.msra.mxu0 %v1620
          %1750 = vmatprep.subr.bf16.mxu0 %v1623
          %1751 = vmatpush1.bf16.msra.mxu0 %v1622
          %1752 = vmatprep.subr.bf16.mxu0 %v1625
          %1753 = vmatpush1.bf16.msra.mxu0 %v1624
          %1754 = vmatprep.subr.bf16.mxu0 %v1627
          %1755 = vmatpush1.bf16.msra.mxu0 %v1626
          %1756 = vmatprep.subr.bf16.mxu0 %v1629
          %1757 = vmatpush1.bf16.msra.mxu0 %v1628
          %1758 = vmatprep.subr.bf16.mxu0 %v1631
          %1759 = vmatpush1.bf16.msra.mxu0 %v1630
          %1760 = vmatprep.subr.bf16.mxu0 %v1633
          %1761 = vmatpush1.bf16.msra.mxu0 %v1632
          %1762 = vmatprep.subr.bf16.mxu0 %v1635
          %1763 = vmatpush1.bf16.msra.mxu0 %v1634
          %1764 = vmatprep.subr.bf16.mxu0 %v1637
          %1765 = vmatpush1.bf16.msra.mxu0 %v1636
          %1766 = vmatprep.subr.bf16.mxu0 %v1639
          %1767 = vmatpush1.bf16.msra.mxu0 %v1638
          %1768 = vmatprep.subr.bf16.mxu0 %v1641
          %1769 = vmatpush1.bf16.msra.mxu0 %v1640
          %1770 = vmatprep.subr.bf16.mxu0 %v1643
          %1771 = vmatpush1.bf16.msra.mxu0 %v1642
          %1772 = vmatprep.subr.bf16.mxu0 %v1645
          %1773 = vmatpush1.bf16.msra.mxu0 %v1644
          %1774 = vmatprep.subr.bf16.mxu0 %v1647
          %1775 = vmatpush1.bf16.msra.mxu0 %v1646
          %1776 = vmatprep.subr.bf16.mxu0 %v1649
          %1777 = vmatpush1.bf16.msra.mxu0 %v1648
          %1778 = vmatprep.mubr.bf16.mxu0 %v1331
          %1779 = vmatmul.mubr.bf16.gmra.mrb[0].mxu0 %v1330
          %v1780 = vpop.f32.mrb[0].mxu0
          %v1781 = vadd.f32 0.0, %v1780
          %v1782 = vpop.f32.mrb[0].mxu0
          %v1783 = vadd.f32 0.0, %v1782
          %v1784 = vpop.f32.mrb[0].mxu0
          %v1785 = vadd.f32 0.0, %v1784
          %v1786 = vpop.f32.mrb[0].mxu0
          %v1787 = vadd.f32 0.0, %v1786
          %1788 = vmatprep.mubr.bf16.mxu0 %v1335
          %1789 = vmatmul.mubr.bf16.gmra.mrb[0].mxu0 %v1334
          %v1790 = vpop.f32.mrb[0].mxu0
          %v1791 = vadd.f32 0.0, %v1790
          %v1792 = vpop.f32.mrb[0].mxu0
          %v1793 = vadd.f32 0.0, %v1792
          %v1794 = vpop.f32.mrb[0].mxu0
          %v1795 = vadd.f32 0.0, %v1794
          %v1796 = vpop.f32.mrb[0].mxu0
          %v1797 = vadd.f32 0.0, %v1796
          %1798 = vmatprep.mubr.bf16.mxu0 %v1339
          %1799 = vmatmul.mubr.bf16.gmra.mrb[0].mxu0 %v1338
          %v1800 = vpop.f32.mrb[0].mxu0
          %v1801 = vadd.f32 0.0, %v1800
          %v1802 = vpop.f32.mrb[0].mxu0
          %v1803 = vadd.f32 0.0, %v1802
          %v1804 = vpop.f32.mrb[0].mxu0
          %v1805 = vadd.f32 0.0, %v1804
          %v1806 = vpop.f32.mrb[0].mxu0
          %v1807 = vadd.f32 0.0, %v1806
          %1808 = vmatprep.mubr.bf16.mxu0 %v1343
          %1809 = vmatmul.mubr.bf16.gmra.mrb[0].mxu0 %v1342
          %v1810 = vpop.f32.mrb[0].mxu0
          %v1811 = vadd.f32 0.0, %v1810
          %v1812 = vpop.f32.mrb[0].mxu0
          %v1813 = vadd.f32 0.0, %v1812
          %v1814 = vpop.f32.mrb[0].mxu0
          %v1815 = vadd.f32 0.0, %v1814
          %v1816 = vpop.f32.mrb[0].mxu0
          %v1817 = vadd.f32 0.0, %v1816
          %1818 = vmatprep.mubr.bf16.mxu0 %v1347
          %1819 = vmatmul.mubr.bf16.gmra.mrb[0].mxu0 %v1346
          %v1820 = vpop.f32.mrb[0].mxu0
          %v1821 = vadd.f32 0.0, %v1820
          %v1822 = vpop.f32.mrb[0].mxu0
          %v1823 = vadd.f32 0.0, %v1822
          %v1824 = vpop.f32.mrb[0].mxu0
          %v1825 = vadd.f32 0.0, %v1824
          %v1826 = vpop.f32.mrb[0].mxu0
          %v1827 = vadd.f32 0.0, %v1826
          %1828 = vmatprep.mubr.bf16.mxu0 %v1351
          %1829 = vmatmul.mubr.bf16.gmra.mrb[0].mxu0 %v1350
          %v1830 = vpop.f32.mrb[0].mxu0
          %v1831 = vadd.f32 0.0, %v1830
          %v1832 = vpop.f32.mrb[0].mxu0
          %v1833 = vadd.f32 0.0, %v1832
          %v1834 = vpop.f32.mrb[0].mxu0
          %v1835 = vadd.f32 0.0, %v1834
          %v1836 = vpop.f32.mrb[0].mxu0
          %v1837 = vadd.f32 0.0, %v1836
          %1838 = vmatprep.mubr.bf16.mxu0 %v1355
          %1839 = vmatmul.mubr.bf16.gmra.mrb[0].mxu0 %v1354
          %v1840 = vpop.f32.mrb[0].mxu0
          %v1841 = vadd.f32 0.0, %v1840
          %v1842 = vpop.f32.mrb[0].mxu0
          %v1843 = vadd.f32 0.0, %v1842
          %v1844 = vpop.f32.mrb[0].mxu0
          %v1845 = vadd.f32 0.0, %v1844
          %v1846 = vpop.f32.mrb[0].mxu0
          %v1847 = vadd.f32 0.0, %v1846
          %1848 = vmatprep.mubr.bf16.mxu0 %v1359
          %1849 = vmatmul.mubr.bf16.gmra.mrb[0].mxu0 %v1358
          %v1850 = vpop.f32.mrb[0].mxu0
          %v1851 = vadd.f32 0.0, %v1850
          %v1852 = vpop.f32.mrb[0].mxu0
          %v1853 = vadd.f32 0.0, %v1852
          %v1854 = vpop.f32.mrb[0].mxu0
          %v1855 = vadd.f32 0.0, %v1854
          %v1856 = vpop.f32.mrb[0].mxu0
          %v1857 = vadd.f32 0.0, %v1856
          %1858 = vdwg.mxu0
          %1859 = vmatprep.subr.bf16.mxu0 %v1651
          %1860 = vmatpush1.bf16.msra.mxu0 %v1650
          %1861 = vmatprep.subr.bf16.mxu0 %v1653
          %1862 = vmatpush1.bf16.msra.mxu0 %v1652
          %1863 = vmatprep.subr.bf16.mxu0 %v1655
          %1864 = vmatpush1.bf16.msra.mxu0 %v1654
          %1865 = vmatprep.subr.bf16.mxu0 %v1657
          %1866 = vmatpush1.bf16.msra.mxu0 %v1656
          %1867 = vmatprep.subr.bf16.mxu0 %v1659
          %1868 = vmatpush1.bf16.msra.mxu0 %v1658
          %1869 = vmatprep.subr.bf16.mxu0 %v1661
          %1870 = vmatpush1.bf16.msra.mxu0 %v1660
          %1871 = vmatprep.subr.bf16.mxu0 %v1663
          %1872 = vmatpush1.bf16.msra.mxu0 %v1662
          %1873 = vmatprep.subr.bf16.mxu0 %v1665
          %1874 = vmatpush1.bf16.msra.mxu0 %v1664
          %1875 = vmatprep.subr.bf16.mxu0 %v1667
          %1876 = vmatpush1.bf16.msra.mxu0 %v1666
          %1877 = vmatprep.subr.bf16.mxu0 %v1669
          %1878 = vmatpush1.bf16.msra.mxu0 %v1668
          %1879 = vmatprep.subr.bf16.mxu0 %v1671
          %1880 = vmatpush1.bf16.msra.mxu0 %v1670
          %1881 = vmatprep.subr.bf16.mxu0 %v1673
          %1882 = vmatpush1.bf16.msra.mxu0 %v1672
          %1883 = vmatprep.subr.bf16.mxu0 %v1675
          %1884 = vmatpush1.bf16.msra.mxu0 %v1674
          %1885 = vmatprep.subr.bf16.mxu0 %v1677
          %1886 = vmatpush1.bf16.msra.mxu0 %v1676
          %1887 = vmatprep.subr.bf16.mxu0 %v1679
          %1888 = vmatpush1.bf16.msra.mxu0 %v1678
          %1889 = vmatprep.subr.bf16.mxu0 %v1681
          %1890 = vmatpush1.bf16.msra.mxu0 %v1680
          %1891 = vmatprep.mubr.bf16.mxu0 %v1333
          %1892 = vmatmul.mubr.bf16.gmra.mrb[0].mxu0 %v1332
          %v1893 = vpop.f32.mrb[0].mxu0
          %v1894 = vadd.f32 %v1781, %v1893
          %v1895 = vpop.f32.mrb[0].mxu0
          %v1896 = vadd.f32 %v1783, %v1895
          %v1897 = vpop.f32.mrb[0].mxu0
          %v1898 = vadd.f32 %v1785, %v1897
          %v1899 = vpop.f32.mrb[0].mxu0
          %v1900 = vadd.f32 %v1787, %v1899
          %1901 = vmatprep.mubr.bf16.mxu0 %v1337
          %1902 = vmatmul.mubr.bf16.gmra.mrb[0].mxu0 %v1336
          %v1903 = vpop.f32.mrb[0].mxu0
          %v1904 = vadd.f32 %v1791, %v1903
          %v1905 = vpop.f32.mrb[0].mxu0
          %v1906 = vadd.f32 %v1793, %v1905
          %v1907 = vpop.f32.mrb[0].mxu0
          %v1908 = vadd.f32 %v1795, %v1907
          %v1909 = vpop.f32.mrb[0].mxu0
          %v1910 = vadd.f32 %v1797, %v1909
          %1911 = vmatprep.mubr.bf16.mxu0 %v1341
          %1912 = vmatmul.mubr.bf16.gmra.mrb[0].mxu0 %v1340
          %v1913 = vpop.f32.mrb[0].mxu0
          %v1914 = vadd.f32 %v1801, %v1913
          %v1915 = vpop.f32.mrb[0].mxu0
          %v1916 = vadd.f32 %v1803, %v1915
          %v1917 = vpop.f32.mrb[0].mxu0
          %v1918 = vadd.f32 %v1805, %v1917
          %v1919 = vpop.f32.mrb[0].mxu0
          %v1920 = vadd.f32 %v1807, %v1919
          %1921 = vmatprep.mubr.bf16.mxu0 %v1345
          %1922 = vmatmul.mubr.bf16.gmra.mrb[0].mxu0 %v1344
          %v1923 = vpop.f32.mrb[0].mxu0
          %v1924 = vadd.f32 %v1811, %v1923
          %v1925 = vpop.f32.mrb[0].mxu0
          %v1926 = vadd.f32 %v1813, %v1925
          %v1927 = vpop.f32.mrb[0].mxu0
          %v1928 = vadd.f32 %v1815, %v1927
          %v1929 = vpop.f32.mrb[0].mxu0
          %v1930 = vadd.f32 %v1817, %v1929
          %1931 = vmatprep.mubr.bf16.mxu0 %v1349
          %1932 = vmatmul.mubr.bf16.gmra.mrb[0].mxu0 %v1348
          %v1933 = vpop.f32.mrb[0].mxu0
          %v1934 = vadd.f32 %v1821, %v1933
          %v1935 = vpop.f32.mrb[0].mxu0
          %v1936 = vadd.f32 %v1823, %v1935
          %v1937 = vpop.f32.mrb[0].mxu0
          %v1938 = vadd.f32 %v1825, %v1937
          %v1939 = vpop.f32.mrb[0].mxu0
          %v1940 = vadd.f32 %v1827, %v1939
          %1941 = vmatprep.mubr.bf16.mxu0 %v1353
          %1942 = vmatmul.mubr.bf16.gmra.mrb[0].mxu0 %v1352
          %v1943 = vpop.f32.mrb[0].mxu0
          %v1944 = vadd.f32 %v1831, %v1943
          %v1945 = vpop.f32.mrb[0].mxu0
          %v1946 = vadd.f32 %v1833, %v1945
          %v1947 = vpop.f32.mrb[0].mxu0
          %v1948 = vadd.f32 %v1835, %v1947
          %v1949 = vpop.f32.mrb[0].mxu0
          %v1950 = vadd.f32 %v1837, %v1949
          %1951 = vmatprep.mubr.bf16.mxu0 %v1357
          %1952 = vmatmul.mubr.bf16.gmra.mrb[0].mxu0 %v1356
          %v1953 = vpop.f32.mrb[0].mxu0
          %v1954 = vadd.f32 %v1841, %v1953
          %v1955 = vpop.f32.mrb[0].mxu0
          %v1956 = vadd.f32 %v1843, %v1955
          %v1957 = vpop.f32.mrb[0].mxu0
          %v1958 = vadd.f32 %v1845, %v1957
          %v1959 = vpop.f32.mrb[0].mxu0
          %v1960 = vadd.f32 %v1847, %v1959
          %1961 = vmatprep.mubr.bf16.mxu0 %v1361
          %1962 = vmatmul.mubr.bf16.gmra.mrb[0].mxu0 %v1360
          %v1963 = vpop.f32.mrb[0].mxu0
          %v1964 = vadd.f32 %v1851, %v1963
          %v1965 = vpop.f32.mrb[0].mxu0
          %v1966 = vadd.f32 %v1853, %v1965
          %v1967 = vpop.f32.mrb[0].mxu0
          %v1968 = vadd.f32 %v1855, %v1967
          %v1969 = vpop.f32.mrb[0].mxu0
          %v1970 = vadd.f32 %v1857, %v1969
          %1971 = vdwg.mxu0
          %v1972 = vadd.f32 %v1234, %v1894
          %v1973 = vadd.f32 %v1235, %v1896
          %v1974 = vadd.f32 %v1236, %v1898
          %v1975 = vadd.f32 %v1237, %v1900
          %v1976 = vadd.f32 %v1238, %v1904
          %v1977 = vadd.f32 %v1239, %v1906
          %v1978 = vadd.f32 %v1240, %v1908
          %v1979 = vadd.f32 %v1241, %v1910
          %v1980 = vadd.f32 %v1242, %v1914
          %v1981 = vadd.f32 %v1243, %v1916
          %v1982 = vadd.f32 %v1244, %v1918
          %v1983 = vadd.f32 %v1245, %v1920
          %v1984 = vadd.f32 %v1246, %v1924
          %v1985 = vadd.f32 %v1247, %v1926
          %v1986 = vadd.f32 %v1248, %v1928
          %v1987 = vadd.f32 %v1249, %v1930
          %v1988 = vadd.f32 %v1250, %v1934
          %v1989 = vadd.f32 %v1251, %v1936
          %v1990 = vadd.f32 %v1252, %v1938
          %v1991 = vadd.f32 %v1253, %v1940
          %v1992 = vadd.f32 %v1254, %v1944
          %v1993 = vadd.f32 %v1255, %v1946
          %v1994 = vadd.f32 %v1256, %v1948
          %v1995 = vadd.f32 %v1257, %v1950
          %v1996 = vadd.f32 %v1258, %v1954
          %v1997 = vadd.f32 %v1259, %v1956
          %v1998 = vadd.f32 %v1260, %v1958
          %v1999 = vadd.f32 %v1261, %v1960
          %v2000 = vadd.f32 %v1262, %v1964
          %v2001 = vadd.f32 %v1263, %v1966
          %v2002 = vadd.f32 %v1264, %v1968
          %v2003 = vadd.f32 %v1265, %v1970
          %2004 = vst [vmem:[%s357] sm:$0xff] %v1972
          %2005 = vst [vmem:[%s357 + $0x8] sm:$0xff] %v1973
          %2006 = vst [vmem:[%s357 + $0x10] sm:$0xff] %v1974
          %2007 = vst [vmem:[%s357 + $0x18] sm:$0xff] %v1975
          %2008 = vst [vmem:[%s357 + $0x20] sm:$0xff] %v1976
          %2009 = vst [vmem:[%s357 + $0x28] sm:$0xff] %v1977
          %2010 = vst [vmem:[%s357 + $0x30] sm:$0xff] %v1978
          %2011 = vst [vmem:[%s357 + $0x38] sm:$0xff] %v1979
          %2012 = vst [vmem:[%s357 + $0x40] sm:$0xff] %v1980
          %2013 = vst [vmem:[%s357 + $0x48] sm:$0xff] %v1981
          %2014 = vst [vmem:[%s357 + $0x50] sm:$0xff] %v1982
          %2015 = vst [vmem:[%s357 + $0x58] sm:$0xff] %v1983
          %2016 = vst [vmem:[%s357 + $0x60] sm:$0xff] %v1984
          %2017 = vst [vmem:[%s357 + $0x68] sm:$0xff] %v1985
          %2018 = vst [vmem:[%s357 + $0x70] sm:$0xff] %v1986
          %2019 = vst [vmem:[%s357 + $0x78] sm:$0xff] %v1987
          %2020 = vst [vmem:[%s357 + $0x80] sm:$0xff] %v1988
          %2021 = vst [vmem:[%s357 + $0x88] sm:$0xff] %v1989
          %2022 = vst [vmem:[%s357 + $0x90] sm:$0xff] %v1990
          %2023 = vst [vmem:[%s357 + $0x98] sm:$0xff] %v1991
          %2024 = vst [vmem:[%s357 + $0xa0] sm:$0xff] %v1992
          %2025 = vst [vmem:[%s357 + $0xa8] sm:$0xff] %v1993
          %2026 = vst [vmem:[%s357 + $0xb0] sm:$0xff] %v1994
          %2027 = vst [vmem:[%s357 + $0xb8] sm:$0xff] %v1995
          %2028 = vst [vmem:[%s357 + $0xc0] sm:$0xff] %v1996
          %2029 = vst [vmem:[%s357 + $0xc8] sm:$0xff] %v1997
          %2030 = vst [vmem:[%s357 + $0xd0] sm:$0xff] %v1998
          %2031 = vst [vmem:[%s357 + $0xd8] sm:$0xff] %v1999
          %2032 = vst [vmem:[%s357 + $0xe0] sm:$0xff] %v2000
          %2033 = vst [vmem:[%s357 + $0xe8] sm:$0xff] %v2001
          %2034 = vst [vmem:[%s357 + $0xf0] sm:$0xff] %v2002
          %2035 = vst [vmem:[%s357 + $0xf8] sm:$0xff] %v2003
        $region60: #{tpu_custom_call.1} parent=35 // pred_fallthru
          _
        %s2036 = sand.u32 %s173, 1
        %s2037 = scalar_lea.sflag [#allocation4], %s2036
        %s2038 = sand.u32 %s173, 1
        %s2039 = smul.addr %s2038, 256
        %s2040 = scalar_lea.vmem [#allocation8], %s2039
        // Predicated region
        $region61: #{tpu_custom_call.1} parent=35 // pred_check
          %p2041 = pneg %p183
        $region62: #{tpu_custom_call.1} parent=35 // pred_check_branch
          %2043 = sbr.rel (%p2041) target = $region64
        $region63: #{tpu_custom_call.1} parent=35 // pred_region
          %s2044 = smul.u32 16, %s29
          %s2045 = smul.u32 2, %s30
          %s2047 = ssub.s32 4096, 4096
          %2048 = vsyncadd %s2037, %s2047
          %s2049 = smul.addr %s2044, 4
          %s2050 = sadd.s32 %s2045, %s2049
          %s2051 = smul.addr %s2050, 128
          %s2052 = scalar_lea.hbm %s4, %s2051
          %s2053 = sshll.u32 %s2040, 4
          %s2054 = int_to_ptr.vmem [resolvable:$true] %s2053
          %2059 = dma.vmem_to_hbm [thread:$0]  %s2054, 4096, %s2052, %s2037, 256, 512, 16
        $region64: #{tpu_custom_call.1} parent=35 // pred_fallthru
          _
      $region36: #{tpu_custom_call.1} parent=5 // pred_fallthru
        _
      %p2060 = scmp.le.s32.totalorder 2, %s19
      // Predicated region
      $region65: #{tpu_custom_call.1} parent=5 // pred_check
        %p2061 = pneg %p2060
      $region66: #{tpu_custom_call.1} parent=5 // pred_check_branch
        %2063 = sbr.rel (%p2061) target = $region68
      $region67: #{tpu_custom_call.1} parent=5 // pred_region
        %s2064 = ssub.s32 %s19, 2
        // Predicated region
        $region69: #{tpu_custom_call.1} parent=67 // pred_check
          %p2065 = pneg %p189
        $region70: #{tpu_custom_call.1} parent=67 // pred_check_branch
          %2067 = sbr.rel (%p2065) target = $region72
        $region71: #{tpu_custom_call.1} parent=67 // pred_region
          %s2068 = sand.u32 %s174, 1
          %s2069 = scalar_lea.sflag [#allocation4], %s2068
          %s2070 = sand.u32 %s174, 1
          %s2071 = smul.addr %s2070, 256
          %s2072 = scalar_lea.vmem [#allocation8], %s2071
          %2073 = dma.done %s2069, 4096
        $region72: #{tpu_custom_call.1} parent=67 // pred_fallthru
          _
      $region68: #{tpu_custom_call.1} parent=5 // pred_fallthru
        _
    $region6: #{tpu_custom_call.1} parent=1 // loop_footer
      %s23 = sadd.s32 1, %s19
    $region7: #{tpu_custom_call.1} parent=1 // loop_footer_branch
      %18 = sbr.rel target = $region3
    $region8: #{tpu_custom_call.1} parent=1 // loop_exit
      _
    %2074 = vsyncpa [#allocation3], 1
    %s2075 = scalar_lea.sflag [#allocation3], 1
    %2076 = vsyncpa %s2075, 1
    %2077 = vsyncpa [#allocation6], 1
    %s2078 = scalar_lea.sflag [#allocation6], 1
    %2079 = vsyncpa %s2078, 1
    %2080 = vsyncpa [#allocation4], 1
    %s2081 = scalar_lea.sflag [#allocation4], 1
    %2082 = vsyncpa %s2081, 1

</llo_original>
